<compile_context>
chip_gen: v6e
topology: v6e:2x2x1
jax: 0.10.0
libtpu: 0.0.40
codegen_flags: <defaults>
</compile_context>

<pallas_src>
import math

import jax
import jax.numpy as jnp
import numpy as np
from jax.experimental import pallas as pl
from jax.experimental.pallas import tpu as pltpu

# ----------------------- model hyper-parameters (small) ----------------------
INPUT1 = 6                  # input1_size
INPUT2 = 2                  # input2_size
SEQ_K = INPUT1 + INPUT2     # 8
CH = 8                      # channels == d_model
NUM_HEADS = 2
HEAD_DIM = CH // NUM_HEADS
NUM_LAYERS = 2
HIDDEN = 16                 # hidden_size
N_OUT = 4                   # n_outputs
BATCH = 2
LN_EPS = 1e-5
SCALE = 1.0 / math.sqrt(HEAD_DIM)
NEG_BIG = -1e9


# --------------------------------- kernel ------------------------------------
def xpapformer_kernel(x_ref, mask_ref,
                      wqkv_ref, bqkv_ref, wo_ref, bo_ref,
                      ln1w_ref, ln1b_ref, w1_ref, b1_ref, w2_ref, b2_ref,
                      ln2w_ref, ln2b_ref,
                      fc1w_ref, fc1sel_ref, fc1fold_ref, bsum_ref, fc2_ref,
                      out_ref):
    x = x_ref[...]        # (B*K, C)  batch folded into sublanes
    mask = mask_ref[...]  # (B*K, B*K) additive bias: 0 valid / -1e9 (pad or cross-batch)

    def layer_norm(v, w, b):
        mu = jnp.mean(v, axis=-1, keepdims=True)
        var = jnp.mean((v - mu) ** 2, axis=-1, keepdims=True)
        return (v - mu) * jax.lax.rsqrt(var + LN_EPS) * w + b

    for l in range(NUM_LAYERS):
        # ------------- multi-head self-attention (post-norm layer) -----------
        # fused QKV projection: single (B*K,C)@(C,3C) MXU push
        qkv = jnp.dot(x, wqkv_ref[l], preferred_element_type=jnp.float32) + bqkv_ref[l]

        heads = []
        for h in range(NUM_HEADS):
            lo = h * HEAD_DIM
            q = qkv[:, lo:lo + HEAD_DIM]                       # (B*K, Dh)
            k = qkv[:, CH + lo:CH + lo + HEAD_DIM]
            v = qkv[:, 2 * CH + lo:2 * CH + lo + HEAD_DIM]
            # scores over all B*K keys; cross-batch terms are killed by `mask`
            s = jax.lax.dot_general(q, k, (((1,), (1,)), ((), ())),
                                    preferred_element_type=jnp.float32) * SCALE
            s = s + mask
            s = s - jnp.max(s, axis=-1, keepdims=True)
            e = jnp.exp(s)
            p = e * pl.reciprocal(jnp.sum(e, axis=-1, keepdims=True), approx=True)
            heads.append(jnp.dot(p, v, preferred_element_type=jnp.float32))   # (B*K, Dh)

        o = jnp.concatenate(heads, axis=-1)                    # (B*K, C)
        # fused output projection: one (B*K,C)@(C,C) push
        attn = jnp.dot(o, wo_ref[l], preferred_element_type=jnp.float32) + bo_ref[l]
        x = layer_norm(x + attn, ln1w_ref[l], ln1b_ref[l])

        # ------------------------------ feed-forward --------------------------
        ff = jnp.dot(x, w1_ref[l], preferred_element_type=jnp.float32) + b1_ref[l]
        ff = jnp.maximum(ff, 0.0)
        ff = jnp.dot(ff, w2_ref[l], preferred_element_type=jnp.float32) + b2_ref[l]
        x = layer_norm(x + ff, ln2w_ref[l], ln2b_ref[l])

    # ------- flatten(x) @ fc1 -> leaky_relu -> fc2, without any reshape -------
    # Y[r, k*H+j]   = sum_c x[r,c] * fc1[k*C+c, j]        (lane-dense 8x128 weight)
    # Z = Y * sel   keeps only the k == (r mod K) block per row
    # G = Z @ fold  sums the K lane-blocks -> per-token fc1 contribution
    # h = bsum @ G  sums the K tokens of each batch element == flatten(x) @ fc1
    y = jnp.dot(x, fc1w_ref[...], preferred_element_type=jnp.float32)     # (B*K, K*H)
    z = y * fc1sel_ref[...]
    g = jnp.dot(z, fc1fold_ref[...], preferred_element_type=jnp.float32)  # (B*K, H)
    hfc = jnp.dot(bsum_ref[...], g, preferred_element_type=jnp.float32)   # (B, H)
    hfc = jnp.where(hfc >= 0.0, hfc, 0.01 * hfc)                          # leaky_relu
    out_ref[...] = jnp.dot(hfc, fc2_ref[...], preferred_element_type=jnp.float32)


WEIGHT_ORDER = ["wqkv_t", "bqkv", "wo_t", "bo",
                "ln1_w", "ln1_b", "w1_t", "b1", "w2_t", "b2",
                "ln2_w", "ln2_b",
                "fc1_wide", "fc1_sel", "fc1_fold", "batch_sum", "fc2_t"]


def xpapformer_pallas(x2, attn_bias, params):
    """x2: (B*K, C) activations, attn_bias: (B*K, B*K) additive mask."""
    BK = x2.shape[0]
    B = BK // SEQ_K

    def full_spec(a):
        return pl.BlockSpec(a.shape, lambda b, nd=a.ndim: (0,) * nd)

    weights = [params[name] for name in WEIGHT_ORDER]
    in_specs = [full_spec(x2), full_spec(attn_bias)] + [full_spec(w) for w in weights]

    out = pl.pallas_call(
        xpapformer_kernel,
        out_shape=jax.ShapeDtypeStruct((B, N_OUT), jnp.float32),
        grid_spec=pltpu.PrefetchScalarGridSpec(
            num_scalar_prefetch=0,
            grid=(1,),                      # whole batch in a single program
            in_specs=in_specs,
            out_specs=pl.BlockSpec((B, N_OUT), lambda b: (0, 0)),
        ),
        compiler_params=pltpu.CompilerParams(dimension_semantics=("parallel",)),
    )(x2, attn_bias, *weights)
    return out


# --------------------------- parameter construction --------------------------
def init_params(key):
    ks = jax.random.split(key, 16)

    def nrm(k, shape, scale=0.1):
        return scale * jax.random.normal(k, shape, dtype=jnp.float32)

    # PyTorch-layout parameters (same shapes as XPAPformer.__init__)
    ip_w = nrm(ks[0], (CH, 1))                        # input_project: Linear(1, C)
    ip_b = nrm(ks[1], (CH,))
    in_proj_w = nrm(ks[2], (NUM_LAYERS, 3 * CH, CH))  # self_attn.in_proj_weight
    in_proj_b = nrm(ks[3], (NUM_LAYERS, 3 * CH))
    out_proj_w = nrm(ks[4], (NUM_LAYERS, CH, CH))
    out_proj_b = nrm(ks[5], (NUM_LAYERS, CH))
    lin1_w = nrm(ks[6], (NUM_LAYERS, 4 * CH, CH))
    lin1_b = nrm(ks[7], (NUM_LAYERS, 4 * CH))
    lin2_w = nrm(ks[8], (NUM_LAYERS, CH, 4 * CH))
    lin2_b = nrm(ks[9], (NUM_LAYERS, CH))
    ln1_w = 1.0 + nrm(ks[10], (NUM_LAYERS, CH))
    ln1_b = nrm(ks[11], (NUM_LAYERS, CH))
    ln2_w = 1.0 + nrm(ks[12], (NUM_LAYERS, CH))
    ln2_b = nrm(ks[13], (NUM_LAYERS, CH))
    fc1_w = nrm(ks[14], (HIDDEN, CH * SEQ_K))         # Linear(C*K, H, bias=False)
    fc2_w = nrm(ks[15], (N_OUT, HIDDEN))              # Linear(H, n_out, bias=False)

    # ---------------- kernel layouts: fused + lane-dense ---------------------
    wqkv_t = jnp.transpose(in_proj_w, (0, 2, 1))                  # (L, C, 3C): cols = [q|k|v]
    bqkv = in_proj_b.reshape(NUM_LAYERS, 1, 3 * CH)
    wo_t = jnp.transpose(out_proj_w, (0, 2, 1))                   # (L, C, C)
    bo = out_proj_b.reshape(NUM_LAYERS, 1, CH)

    fc1_t = fc1_w.T                                               # (K*C, HIDDEN)
    # wide layout: fc1_wide[c, k*H + j] = fc1_t[k*C + c, j]  -> (C, K*HIDDEN) = (8,128)
    fc1_wide = jnp.transpose(fc1_t.reshape(SEQ_K, CH, HIDDEN), (1, 0, 2)
                             ).reshape(CH, SEQ_K * HIDDEN)

    # constant selection / folding matrices for the reshape-free flatten
    r = np.arange(BATCH * SEQ_K)
    m = np.arange(SEQ_K * HIDDEN)
    fc1_sel = ((m[None, :] // HIDDEN) == (r[:, None] % SEQ_K)).astype(np.float32)
    fc1_fold = np.tile(np.eye(HIDDEN, dtype=np.float32), (SEQ_K, 1))       # (K*H, H)
    batch_sum = ((r[None, :] // SEQ_K) ==
                 np.arange(BATCH)[:, None]).astype(np.float32)             # (B, B*K)

    return dict(
        ip_w=ip_w[:, 0], ip_b=ip_b,
        wqkv_t=wqkv_t, bqkv=bqkv, wo_t=wo_t, bo=bo,
        ln1_w=ln1_w.reshape(NUM_LAYERS, 1, CH), ln1_b=ln1_b.reshape(NUM_LAYERS, 1, CH),
        w1_t=jnp.transpose(lin1_w, (0, 2, 1)), b1=lin1_b.reshape(NUM_LAYERS, 1, 4 * CH),
        w2_t=jnp.transpose(lin2_w, (0, 2, 1)), b2=lin2_b.reshape(NUM_LAYERS, 1, CH),
        ln2_w=ln2_w.reshape(NUM_LAYERS, 1, CH), ln2_b=ln2_b.reshape(NUM_LAYERS, 1, CH),
        fc1_t=fc1_t, fc2_t=fc2_w.T,
        fc1_wide=fc1_wide,
        fc1_sel=jnp.asarray(fc1_sel),
        fc1_fold=jnp.asarray(fc1_fold),
        batch_sum=jnp.asarray(batch_sum),
    )


# ------------------------------- glue (plain JAX) ----------------------------
def prepare_inputs(xp, ap, xp_mask, params):
    """Input projection, concat, positional encoding, key-padding -> kernel inputs."""
    B = xp.shape[0]
    # input_project: Linear(1, C) applied to xp.reshape(-1, input1, 1)
    xp_proj = xp[..., None] * params["ip_w"][None, None, :] + params["ip_b"][None, None, :]
    x = jnp.concatenate([xp_proj, ap], axis=1)                   # (B, K, C)

    # add_position_encoding (same formula as the PyTorch module)
    position = jnp.arange(CH, dtype=jnp.float32)[:, None]
    div_term = jnp.exp(jnp.arange(0, SEQ_K, 2, dtype=jnp.float32)
                       * (-math.log(10000.0) / SEQ_K))
    pe = jnp.zeros((CH, SEQ_K), jnp.float32)
    pe = pe.at[:, 0::2].set(jnp.sin(position * div_term))
    pe = pe.at[:, 1::2].set(jnp.cos(position * div_term))
    x = x + pe.T[None, :, :]                                     # x[b,k,c] += pe[c,k]

    # key padding mask: True = ignore; ap positions are never masked (ap given)
    x_mask = jnp.concatenate([xp_mask, jnp.zeros((B, INPUT2), dtype=bool)], axis=1)  # (B,K)
    bias = jnp.where(x_mask, NEG_BIG, 0.0).astype(jnp.float32)[:, None, :]           # (B,1,K)

    # kernel inputs: batch folded into rows + block-diagonal additive attention mask
    # (a fully-masked row would give a uniform softmax, like the -1e9 reference;
    #  not reachable here since ap positions are never masked)
    x2 = x.reshape(B * SEQ_K, CH).astype(jnp.float32)
    rr = jnp.arange(B * SEQ_K)
    same_batch = (rr[:, None] // SEQ_K) == (rr[None, :] // SEQ_K)
    keypad = x_mask.reshape(B * SEQ_K)
    attn_bias = jnp.where(same_batch & jnp.logical_not(keypad)[None, :],
                          0.0, NEG_BIG).astype(jnp.float32)                          # (B*K,B*K)
    return x.astype(jnp.float32), bias, x2, attn_bias


# ------------------------- pure-JAX reference (check) -------------------------
def reference(x, bias, p):
    B = x.shape[0]

    def layer_norm(v, w, b):
        mu = jnp.mean(v, axis=-1, keepdims=True)
        var = jnp.mean((v - mu) ** 2, axis=-1, keepdims=True)
        return (v - mu) * jax.lax.rsqrt(var + LN_EPS) * w + b

    xx = x
    for l in range(NUM_LAYERS):
        qkv = jnp.einsum('bkc,cd->bkd', xx, p['wqkv_t'][l]) + p['bqkv'][l]
        q = qkv[..., :CH].reshape(B, SEQ_K, NUM_HEADS, HEAD_DIM)
        k = qkv[..., CH:2 * CH].reshape(B, SEQ_K, NUM_HEADS, HEAD_DIM)
        v = qkv[..., 2 * CH:].reshape(B, SEQ_K, NUM_HEADS, HEAD_DIM)
        s = jnp.einsum('bqhd,bkhd->bhqk', q, k) * SCALE + bias[:, None, :, :]
        s = s - s.max(-1, keepdims=True)
        e = jnp.exp(s)
        pr = e / e.sum(-1, keepdims=True)
        o = jnp.einsum('bhqk,bkhd->bqhd', pr, v).reshape(B, SEQ_K, CH)
        attn = jnp.einsum('bkd,dc->bkc', o, p['wo_t'][l]) + p['bo'][l]
        xx = layer_norm(xx + attn, p['ln1_w'][l], p['ln1_b'][l])
        ff = jnp.maximum(jnp.einsum('bkc,cf->bkf', xx, p['w1_t'][l]) + p['b1'][l], 0.0)
        ff = jnp.einsum('bkf,fc->bkc', ff, p['w2_t'][l]) + p['b2'][l]
        xx = layer_norm(xx + ff, p['ln2_w'][l], p['ln2_b'][l])

    flat = xx.reshape(B, SEQ_K * CH)
    h = flat @ p['fc1_t']
    h = jnp.where(h >= 0, h, 0.01 * h)
    return h @ p['fc2_t']


# ------------------------------------ main ------------------------------------
if __name__ == "__main__":
    key = jax.random.PRNGKey(0)
    kx, ka, kw = jax.random.split(key, 3)
    params = init_params(kw)

    xp = jax.random.normal(kx, (BATCH, INPUT1), dtype=jnp.float32)
    ap = jax.random.normal(ka, (BATCH, INPUT2, CH), dtype=jnp.float32)
    # mask the last xp token of every batch element (True = padding / ignore)
    xp_mask = jnp.zeros((BATCH, INPUT1), dtype=bool).at[:, -1].set(True)

    x, bias, x2, attn_bias = prepare_inputs(xp, ap, xp_mask, params)
    out = xpapformer_pallas(x2, attn_bias, params)
    out = jax.block_until_ready(out)

    ref = reference(x, bias, params)
    np.testing.assert_allclose(np.asarray(out), np.asarray(ref), rtol=2e-2, atol=2e-2)
    assert out.shape == (BATCH, N_OUT)
    print("KERNEL_OK")
</pallas_src>

<mosaic_0001>
module attributes {stable_mosaic.version = 11 : i64} {
  func.func @xpapformer_kernel(%arg0: i32, %arg1: memref<16x8xf32, #tpu.memory_space<vmem>>, %arg2: memref<16x16xf32, #tpu.memory_space<vmem>>, %arg3: memref<2x8x24xf32, #tpu.memory_space<vmem>>, %arg4: memref<2x1x24xf32, #tpu.memory_space<vmem>>, %arg5: memref<2x8x8xf32, #tpu.memory_space<vmem>>, %arg6: memref<2x1x8xf32, #tpu.memory_space<vmem>>, %arg7: memref<2x1x8xf32, #tpu.memory_space<vmem>>, %arg8: memref<2x1x8xf32, #tpu.memory_space<vmem>>, %arg9: memref<2x8x32xf32, #tpu.memory_space<vmem>>, %arg10: memref<2x1x32xf32, #tpu.memory_space<vmem>>, %arg11: memref<2x32x8xf32, #tpu.memory_space<vmem>>, %arg12: memref<2x1x8xf32, #tpu.memory_space<vmem>>, %arg13: memref<2x1x8xf32, #tpu.memory_space<vmem>>, %arg14: memref<2x1x8xf32, #tpu.memory_space<vmem>>, %arg15: memref<8x128xf32, #tpu.memory_space<vmem>>, %arg16: memref<16x128xf32, #tpu.memory_space<vmem>>, %arg17: memref<128x16xf32, #tpu.memory_space<vmem>>, %arg18: memref<2x16xf32, #tpu.memory_space<vmem>>, %arg19: memref<16x4xf32, #tpu.memory_space<vmem>>, %arg20: memref<2x4xf32, #tpu.memory_space<vmem>>) attributes {dimension_semantics = [#tpu.dimension_semantics<parallel>], iteration_bounds = array<i64: 1>, scalar_prefetch = 0 : i64, scratch_operands = 0 : i64, tpu.core_type = #tpu.core_type<tc>, window_params = [{pipeline_mode = #tpu.pipeline_mode<synchronous>, transform_indices = @transform_0, window_bounds = array<i64: 16, 8>}, {pipeline_mode = #tpu.pipeline_mode<synchronous>, transform_indices = @transform_1, window_bounds = array<i64: 16, 16>}, {pipeline_mode = #tpu.pipeline_mode<synchronous>, transform_indices = @transform_2, window_bounds = array<i64: 2, 8, 24>}, {pipeline_mode = #tpu.pipeline_mode<synchronous>, transform_indices = @transform_3, window_bounds = array<i64: 2, 1, 24>}, {pipeline_mode = #tpu.pipeline_mode<synchronous>, transform_indices = @transform_4, window_bounds = array<i64: 2, 8, 8>}, {pipeline_mode = #tpu.pipeline_mode<synchronous>, transform_indices = @transform_5, window_bounds = array<i64: 2, 1, 8>}, {pipeline_mode = #tpu.pipeline_mode<synchronous>, transform_indices = @transform_6, window_bounds = array<i64: 2, 1, 8>}, {pipeline_mode = #tpu.pipeline_mode<synchronous>, transform_indices = @transform_7, window_bounds = array<i64: 2, 1, 8>}, {pipeline_mode = #tpu.pipeline_mode<synchronous>, transform_indices = @transform_8, window_bounds = array<i64: 2, 8, 32>}, {pipeline_mode = #tpu.pipeline_mode<synchronous>, transform_indices = @transform_9, window_bounds = array<i64: 2, 1, 32>}, {pipeline_mode = #tpu.pipeline_mode<synchronous>, transform_indices = @transform_10, window_bounds = array<i64: 2, 32, 8>}, {pipeline_mode = #tpu.pipeline_mode<synchronous>, transform_indices = @transform_11, window_bounds = array<i64: 2, 1, 8>}, {pipeline_mode = #tpu.pipeline_mode<synchronous>, transform_indices = @transform_12, window_bounds = array<i64: 2, 1, 8>}, {pipeline_mode = #tpu.pipeline_mode<synchronous>, transform_indices = @transform_13, window_bounds = array<i64: 2, 1, 8>}, {pipeline_mode = #tpu.pipeline_mode<synchronous>, transform_indices = @transform_14, window_bounds = array<i64: 8, 128>}, {pipeline_mode = #tpu.pipeline_mode<synchronous>, transform_indices = @transform_15, window_bounds = array<i64: 16, 128>}, {pipeline_mode = #tpu.pipeline_mode<synchronous>, transform_indices = @transform_16, window_bounds = array<i64: 128, 16>}, {pipeline_mode = #tpu.pipeline_mode<synchronous>, transform_indices = @transform_17, window_bounds = array<i64: 2, 16>}, {pipeline_mode = #tpu.pipeline_mode<synchronous>, transform_indices = @transform_18, window_bounds = array<i64: 16, 4>}, {pipeline_mode = #tpu.pipeline_mode<synchronous>, transform_indices = @transform_19, window_bounds = array<i64: 2, 4>}]} {
    %c0 = arith.constant 0 : index
    %c0_0 = arith.constant 0 : index
    %0 = vector.load %arg1[%c0, %c0_0] : memref<16x8xf32, #tpu.memory_space<vmem>>, vector<16x8xf32>
    %c0_1 = arith.constant 0 : index
    %c0_2 = arith.constant 0 : index
    %1 = vector.load %arg2[%c0_1, %c0_2] : memref<16x16xf32, #tpu.memory_space<vmem>>, vector<16x16xf32>
    %c0_3 = arith.constant 0 : index
    %c0_4 = arith.constant 0 : index
    %c0_5 = arith.constant 0 : index
    %2 = vector.load %arg3[%c0_3, %c0_4, %c0_5] : memref<2x8x24xf32, #tpu.memory_space<vmem>>, vector<1x8x24xf32>
    %3 = vector.shape_cast %2 : vector<1x8x24xf32> to vector<8x24xf32>
    %cst = arith.constant dense<0.000000e+00> : vector<16x24xf32>
    %4 = tpu.matmul %0, %3, %cst {dimension_numbers = #tpu.dot_dimension_numbers<[1], [0], [0], [1], [0, 0, 1, 1], [], []>} : vector<16x8xf32>, vector<8x24xf32>, vector<16x24xf32> -> vector<16x24xf32>
    %c0_6 = arith.constant 0 : index
    %c0_7 = arith.constant 0 : index
    %c0_8 = arith.constant 0 : index
    %5 = vector.load %arg4[%c0_6, %c0_7, %c0_8] : memref<2x1x24xf32, #tpu.memory_space<vmem>>, vector<1x1x24xf32>
    %6 = vector.shape_cast %5 : vector<1x1x24xf32> to vector<1x24xf32>
    %7 = vector.broadcast %6 : vector<1x24xf32> to vector<16x24xf32>
    %8 = arith.addf %4, %7 : vector<16x24xf32>
    %9 = vector.extract_strided_slice %8 {offsets = [0, 0], sizes = [16, 4], strides = [1, 1]} : vector<16x24xf32> to vector<16x4xf32>
    %10 = vector.extract_strided_slice %8 {offsets = [0, 8], sizes = [16, 4], strides = [1, 1]} : vector<16x24xf32> to vector<16x4xf32>
    %11 = vector.extract_strided_slice %8 {offsets = [0, 16], sizes = [16, 4], strides = [1, 1]} : vector<16x24xf32> to vector<16x4xf32>
    %cst_9 = arith.constant dense<0.000000e+00> : vector<16x16xf32>
    %12 = tpu.matmul %9, %10, %cst_9 {dimension_numbers = #tpu.dot_dimension_numbers<[1], [1], [0], [0], [0, 0, 1, 0], [], []>} : vector<16x4xf32>, vector<16x4xf32>, vector<16x16xf32> -> vector<16x16xf32>
    %cst_10 = arith.constant 5.000000e-01 : f32
    %13 = vector.broadcast %cst_10 : f32 to vector<16x16xf32>
    %14 = arith.mulf %12, %13 : vector<16x16xf32>
    %15 = arith.addf %14, %1 : vector<16x16xf32>
    %cst_11 = arith.constant dense<0xFF800000> : vector<16xf32>
    %16 = vector.multi_reduction <maximumf>, %15, %cst_11 [1] : vector<16x16xf32> to vector<16xf32>
    %17 = vector.shape_cast %16 : vector<16xf32> to vector<16x1xf32>
    %18 = vector.broadcast %17 : vector<16x1xf32> to vector<16x16xf32>
    %19 = arith.subf %15, %18 : vector<16x16xf32>
    %20 = math.exp %19 : vector<16x16xf32>
    %cst_12 = arith.constant dense<0.000000e+00> : vector<16xf32>
    %21 = vector.multi_reduction <add>, %20, %cst_12 [1] : vector<16x16xf32> to vector<16xf32>
    %22 = vector.shape_cast %21 : vector<16xf32> to vector<16x1xf32>
    %23 = tpu.reciprocal %22 {approx = true} : vector<16x1xf32> -> vector<16x1xf32>
    %24 = vector.broadcast %23 : vector<16x1xf32> to vector<16x16xf32>
    %25 = arith.mulf %20, %24 : vector<16x16xf32>
    %cst_13 = arith.constant dense<0.000000e+00> : vector<16x4xf32>
    %26 = tpu.matmul %25, %11, %cst_13 {dimension_numbers = #tpu.dot_dimension_numbers<[1], [0], [0], [1], [0, 0, 1, 1], [], []>} : vector<16x16xf32>, vector<16x4xf32>, vector<16x4xf32> -> vector<16x4xf32>
    %27 = vector.extract_strided_slice %8 {offsets = [0, 4], sizes = [16, 4], strides = [1, 1]} : vector<16x24xf32> to vector<16x4xf32>
    %28 = vector.extract_strided_slice %8 {offsets = [0, 12], sizes = [16, 4], strides = [1, 1]} : vector<16x24xf32> to vector<16x4xf32>
    %29 = vector.extract_strided_slice %8 {offsets = [0, 20], sizes = [16, 4], strides = [1, 1]} : vector<16x24xf32> to vector<16x4xf32>
    %cst_14 = arith.constant dense<0.000000e+00> : vector<16x16xf32>
    %30 = tpu.matmul %27, %28, %cst_14 {dimension_numbers = #tpu.dot_dimension_numbers<[1], [1], [0], [0], [0, 0, 1, 0], [], []>} : vector<16x4xf32>, vector<16x4xf32>, vector<16x16xf32> -> vector<16x16xf32>
    %cst_15 = arith.constant 5.000000e-01 : f32
    %31 = vector.broadcast %cst_15 : f32 to vector<16x16xf32>
    %32 = arith.mulf %30, %31 : vector<16x16xf32>
    %33 = arith.addf %32, %1 : vector<16x16xf32>
    %cst_16 = arith.constant dense<0xFF800000> : vector<16xf32>
    %34 = vector.multi_reduction <maximumf>, %33, %cst_16 [1] : vector<16x16xf32> to vector<16xf32>
    %35 = vector.shape_cast %34 : vector<16xf32> to vector<16x1xf32>
    %36 = vector.broadcast %35 : vector<16x1xf32> to vector<16x16xf32>
    %37 = arith.subf %33, %36 : vector<16x16xf32>
    %38 = math.exp %37 : vector<16x16xf32>
    %cst_17 = arith.constant dense<0.000000e+00> : vector<16xf32>
    %39 = vector.multi_reduction <add>, %38, %cst_17 [1] : vector<16x16xf32> to vector<16xf32>
    %40 = vector.shape_cast %39 : vector<16xf32> to vector<16x1xf32>
    %41 = tpu.reciprocal %40 {approx = true} : vector<16x1xf32> -> vector<16x1xf32>
    %42 = vector.broadcast %41 : vector<16x1xf32> to vector<16x16xf32>
    %43 = arith.mulf %38, %42 : vector<16x16xf32>
    %cst_18 = arith.constant dense<0.000000e+00> : vector<16x4xf32>
    %44 = tpu.matmul %43, %29, %cst_18 {dimension_numbers = #tpu.dot_dimension_numbers<[1], [0], [0], [1], [0, 0, 1, 1], [], []>} : vector<16x16xf32>, vector<16x4xf32>, vector<16x4xf32> -> vector<16x4xf32>
    %45 = tpu.concatenate %26, %44 in 1 : vector<16x4xf32>, vector<16x4xf32> -> vector<16x8xf32>
    %c0_19 = arith.constant 0 : index
    %c0_20 = arith.constant 0 : index
    %c0_21 = arith.constant 0 : index
    %46 = vector.load %arg5[%c0_19, %c0_20, %c0_21] : memref<2x8x8xf32, #tpu.memory_space<vmem>>, vector<1x8x8xf32>
    %47 = vector.shape_cast %46 : vector<1x8x8xf32> to vector<8x8xf32>
    %cst_22 = arith.constant dense<0.000000e+00> : vector<16x8xf32>
    %48 = tpu.matmul %45, %47, %cst_22 {dimension_numbers = #tpu.dot_dimension_numbers<[1], [0], [0], [1], [0, 0, 1, 1], [], []>} : vector<16x8xf32>, vector<8x8xf32>, vector<16x8xf32> -> vector<16x8xf32>
    %c0_23 = arith.constant 0 : index
    %c0_24 = arith.constant 0 : index
    %c0_25 = arith.constant 0 : index
    %49 = vector.load %arg6[%c0_23, %c0_24, %c0_25] : memref<2x1x8xf32, #tpu.memory_space<vmem>>, vector<1x1x8xf32>
    %50 = vector.shape_cast %49 : vector<1x1x8xf32> to vector<1x8xf32>
    %51 = vector.broadcast %50 : vector<1x8xf32> to vector<16x8xf32>
    %52 = arith.addf %48, %51 : vector<16x8xf32>
    %53 = arith.addf %0, %52 : vector<16x8xf32>
    %c0_26 = arith.constant 0 : index
    %c0_27 = arith.constant 0 : index
    %c0_28 = arith.constant 0 : index
    %54 = vector.load %arg7[%c0_26, %c0_27, %c0_28] : memref<2x1x8xf32, #tpu.memory_space<vmem>>, vector<1x1x8xf32>
    %55 = vector.shape_cast %54 : vector<1x1x8xf32> to vector<1x8xf32>
    %c0_29 = arith.constant 0 : index
    %c0_30 = arith.constant 0 : index
    %c0_31 = arith.constant 0 : index
    %56 = vector.load %arg8[%c0_29, %c0_30, %c0_31] : memref<2x1x8xf32, #tpu.memory_space<vmem>>, vector<1x1x8xf32>
    %57 = vector.shape_cast %56 : vector<1x1x8xf32> to vector<1x8xf32>
    %cst_32 = arith.constant dense<0.000000e+00> : vector<16xf32>
    %58 = vector.multi_reduction <add>, %53, %cst_32 [1] : vector<16x8xf32> to vector<16xf32>
    %59 = vector.shape_cast %58 : vector<16xf32> to vector<16x1xf32>
    %cst_33 = arith.constant 8.000000e+00 : f32
    %60 = vector.broadcast %cst_33 : f32 to vector<16x1xf32>
    %61 = arith.divf %59, %60 : vector<16x1xf32>
    %62 = vector.broadcast %61 : vector<16x1xf32> to vector<16x8xf32>
    %63 = arith.subf %53, %62 : vector<16x8xf32>
    %64 = arith.mulf %63, %63 : vector<16x8xf32>
    %cst_34 = arith.constant dense<0.000000e+00> : vector<16xf32>
    %65 = vector.multi_reduction <add>, %64, %cst_34 [1] : vector<16x8xf32> to vector<16xf32>
    %66 = vector.shape_cast %65 : vector<16xf32> to vector<16x1xf32>
    %cst_35 = arith.constant 8.000000e+00 : f32
    %67 = vector.broadcast %cst_35 : f32 to vector<16x1xf32>
    %68 = arith.divf %66, %67 : vector<16x1xf32>
    %69 = vector.broadcast %61 : vector<16x1xf32> to vector<16x8xf32>
    %70 = arith.subf %53, %69 : vector<16x8xf32>
    %cst_36 = arith.constant 9.99999974E-6 : f32
    %71 = vector.broadcast %cst_36 : f32 to vector<16x1xf32>
    %72 = arith.addf %68, %71 : vector<16x1xf32>
    %73 = math.rsqrt %72 : vector<16x1xf32>
    %74 = vector.broadcast %73 : vector<16x1xf32> to vector<16x8xf32>
    %75 = arith.mulf %70, %74 : vector<16x8xf32>
    %76 = vector.broadcast %55 : vector<1x8xf32> to vector<16x8xf32>
    %77 = arith.mulf %75, %76 : vector<16x8xf32>
    %78 = vector.broadcast %57 : vector<1x8xf32> to vector<16x8xf32>
    %79 = arith.addf %77, %78 : vector<16x8xf32>
    %c0_37 = arith.constant 0 : index
    %c0_38 = arith.constant 0 : index
    %c0_39 = arith.constant 0 : index
    %80 = vector.load %arg9[%c0_37, %c0_38, %c0_39] : memref<2x8x32xf32, #tpu.memory_space<vmem>>, vector<1x8x32xf32>
    %81 = vector.shape_cast %80 : vector<1x8x32xf32> to vector<8x32xf32>
    %cst_40 = arith.constant dense<0.000000e+00> : vector<16x32xf32>
    %82 = tpu.matmul %79, %81, %cst_40 {dimension_numbers = #tpu.dot_dimension_numbers<[1], [0], [0], [1], [0, 0, 1, 1], [], []>} : vector<16x8xf32>, vector<8x32xf32>, vector<16x32xf32> -> vector<16x32xf32>
    %c0_41 = arith.constant 0 : index
    %c0_42 = arith.constant 0 : index
    %c0_43 = arith.constant 0 : index
    %83 = vector.load %arg10[%c0_41, %c0_42, %c0_43] : memref<2x1x32xf32, #tpu.memory_space<vmem>>, vector<1x1x32xf32>
    %84 = vector.shape_cast %83 : vector<1x1x32xf32> to vector<1x32xf32>
    %85 = vector.broadcast %84 : vector<1x32xf32> to vector<16x32xf32>
    %86 = arith.addf %82, %85 : vector<16x32xf32>
    %cst_44 = arith.constant 0.000000e+00 : f32
    %87 = vector.broadcast %cst_44 : f32 to vector<16x32xf32>
    %88 = arith.maximumf %86, %87 : vector<16x32xf32>
    %c0_45 = arith.constant 0 : index
    %c0_46 = arith.constant 0 : index
    %c0_47 = arith.constant 0 : index
    %89 = vector.load %arg11[%c0_45, %c0_46, %c0_47] : memref<2x32x8xf32, #tpu.memory_space<vmem>>, vector<1x32x8xf32>
    %90 = vector.shape_cast %89 : vector<1x32x8xf32> to vector<32x8xf32>
    %cst_48 = arith.constant dense<0.000000e+00> : vector<16x8xf32>
    %91 = tpu.matmul %88, %90, %cst_48 {dimension_numbers = #tpu.dot_dimension_numbers<[1], [0], [0], [1], [0, 0, 1, 1], [], []>} : vector<16x32xf32>, vector<32x8xf32>, vector<16x8xf32> -> vector<16x8xf32>
    %c0_49 = arith.constant 0 : index
    %c0_50 = arith.constant 0 : index
    %c0_51 = arith.constant 0 : index
    %92 = vector.load %arg12[%c0_49, %c0_50, %c0_51] : memref<2x1x8xf32, #tpu.memory_space<vmem>>, vector<1x1x8xf32>
    %93 = vector.shape_cast %92 : vector<1x1x8xf32> to vector<1x8xf32>
    %94 = vector.broadcast %93 : vector<1x8xf32> to vector<16x8xf32>
    %95 = arith.addf %91, %94 : vector<16x8xf32>
    %96 = arith.addf %79, %95 : vector<16x8xf32>
    %c0_52 = arith.constant 0 : index
    %c0_53 = arith.constant 0 : index
    %c0_54 = arith.constant 0 : index
    %97 = vector.load %arg13[%c0_52, %c0_53, %c0_54] : memref<2x1x8xf32, #tpu.memory_space<vmem>>, vector<1x1x8xf32>
    %98 = vector.shape_cast %97 : vector<1x1x8xf32> to vector<1x8xf32>
    %c0_55 = arith.constant 0 : index
    %c0_56 = arith.constant 0 : index
    %c0_57 = arith.constant 0 : index
    %99 = vector.load %arg14[%c0_55, %c0_56, %c0_57] : memref<2x1x8xf32, #tpu.memory_space<vmem>>, vector<1x1x8xf32>
    %100 = vector.shape_cast %99 : vector<1x1x8xf32> to vector<1x8xf32>
    %cst_58 = arith.constant dense<0.000000e+00> : vector<16xf32>
    %101 = vector.multi_reduction <add>, %96, %cst_58 [1] : vector<16x8xf32> to vector<16xf32>
    %102 = vector.shape_cast %101 : vector<16xf32> to vector<16x1xf32>
    %cst_59 = arith.constant 8.000000e+00 : f32
    %103 = vector.broadcast %cst_59 : f32 to vector<16x1xf32>
    %104 = arith.divf %102, %103 : vector<16x1xf32>
    %105 = vector.broadcast %104 : vector<16x1xf32> to vector<16x8xf32>
    %106 = arith.subf %96, %105 : vector<16x8xf32>
    %107 = arith.mulf %106, %106 : vector<16x8xf32>
    %cst_60 = arith.constant dense<0.000000e+00> : vector<16xf32>
    %108 = vector.multi_reduction <add>, %107, %cst_60 [1] : vector<16x8xf32> to vector<16xf32>
    %109 = vector.shape_cast %108 : vector<16xf32> to vector<16x1xf32>
    %cst_61 = arith.constant 8.000000e+00 : f32
    %110 = vector.broadcast %cst_61 : f32 to vector<16x1xf32>
    %111 = arith.divf %109, %110 : vector<16x1xf32>
    %112 = vector.broadcast %104 : vector<16x1xf32> to vector<16x8xf32>
    %113 = arith.subf %96, %112 : vector<16x8xf32>
    %cst_62 = arith.constant 9.99999974E-6 : f32
    %114 = vector.broadcast %cst_62 : f32 to vector<16x1xf32>
    %115 = arith.addf %111, %114 : vector<16x1xf32>
    %116 = math.rsqrt %115 : vector<16x1xf32>
    %117 = vector.broadcast %116 : vector<16x1xf32> to vector<16x8xf32>
    %118 = arith.mulf %113, %117 : vector<16x8xf32>
    %119 = vector.broadcast %98 : vector<1x8xf32> to vector<16x8xf32>
    %120 = arith.mulf %118, %119 : vector<16x8xf32>
    %121 = vector.broadcast %100 : vector<1x8xf32> to vector<16x8xf32>
    %122 = arith.addf %120, %121 : vector<16x8xf32>
    %c1 = arith.constant 1 : index
    %c0_63 = arith.constant 0 : index
    %c0_64 = arith.constant 0 : index
    %123 = vector.load %arg3[%c1, %c0_63, %c0_64] : memref<2x8x24xf32, #tpu.memory_space<vmem>>, vector<1x8x24xf32>
    %124 = vector.shape_cast %123 : vector<1x8x24xf32> to vector<8x24xf32>
    %cst_65 = arith.constant dense<0.000000e+00> : vector<16x24xf32>
    %125 = tpu.matmul %122, %124, %cst_65 {dimension_numbers = #tpu.dot_dimension_numbers<[1], [0], [0], [1], [0, 0, 1, 1], [], []>} : vector<16x8xf32>, vector<8x24xf32>, vector<16x24xf32> -> vector<16x24xf32>
    %c1_66 = arith.constant 1 : index
    %c0_67 = arith.constant 0 : index
    %c0_68 = arith.constant 0 : index
    %126 = vector.load %arg4[%c1_66, %c0_67, %c0_68] : memref<2x1x24xf32, #tpu.memory_space<vmem>>, vector<1x1x24xf32>
    %127 = vector.shape_cast %126 : vector<1x1x24xf32> to vector<1x24xf32>
    %128 = vector.broadcast %127 : vector<1x24xf32> to vector<16x24xf32>
    %129 = arith.addf %125, %128 : vector<16x24xf32>
    %130 = vector.extract_strided_slice %129 {offsets = [0, 0], sizes = [16, 4], strides = [1, 1]} : vector<16x24xf32> to vector<16x4xf32>
    %131 = vector.extract_strided_slice %129 {offsets = [0, 8], sizes = [16, 4], strides = [1, 1]} : vector<16x24xf32> to vector<16x4xf32>
    %132 = vector.extract_strided_slice %129 {offsets = [0, 16], sizes = [16, 4], strides = [1, 1]} : vector<16x24xf32> to vector<16x4xf32>
    %cst_69 = arith.constant dense<0.000000e+00> : vector<16x16xf32>
    %133 = tpu.matmul %130, %131, %cst_69 {dimension_numbers = #tpu.dot_dimension_numbers<[1], [1], [0], [0], [0, 0, 1, 0], [], []>} : vector<16x4xf32>, vector<16x4xf32>, vector<16x16xf32> -> vector<16x16xf32>
    %cst_70 = arith.constant 5.000000e-01 : f32
    %134 = vector.broadcast %cst_70 : f32 to vector<16x16xf32>
    %135 = arith.mulf %133, %134 : vector<16x16xf32>
    %136 = arith.addf %135, %1 : vector<16x16xf32>
    %cst_71 = arith.constant dense<0xFF800000> : vector<16xf32>
    %137 = vector.multi_reduction <maximumf>, %136, %cst_71 [1] : vector<16x16xf32> to vector<16xf32>
    %138 = vector.shape_cast %137 : vector<16xf32> to vector<16x1xf32>
    %139 = vector.broadcast %138 : vector<16x1xf32> to vector<16x16xf32>
    %140 = arith.subf %136, %139 : vector<16x16xf32>
    %141 = math.exp %140 : vector<16x16xf32>
    %cst_72 = arith.constant dense<0.000000e+00> : vector<16xf32>
    %142 = vector.multi_reduction <add>, %141, %cst_72 [1] : vector<16x16xf32> to vector<16xf32>
    %143 = vector.shape_cast %142 : vector<16xf32> to vector<16x1xf32>
    %144 = tpu.reciprocal %143 {approx = true} : vector<16x1xf32> -> vector<16x1xf32>
    %145 = vector.broadcast %144 : vector<16x1xf32> to vector<16x16xf32>
    %146 = arith.mulf %141, %145 : vector<16x16xf32>
    %cst_73 = arith.constant dense<0.000000e+00> : vector<16x4xf32>
    %147 = tpu.matmul %146, %132, %cst_73 {dimension_numbers = #tpu.dot_dimension_numbers<[1], [0], [0], [1], [0, 0, 1, 1], [], []>} : vector<16x16xf32>, vector<16x4xf32>, vector<16x4xf32> -> vector<16x4xf32>
    %148 = vector.extract_strided_slice %129 {offsets = [0, 4], sizes = [16, 4], strides = [1, 1]} : vector<16x24xf32> to vector<16x4xf32>
    %149 = vector.extract_strided_slice %129 {offsets = [0, 12], sizes = [16, 4], strides = [1, 1]} : vector<16x24xf32> to vector<16x4xf32>
    %150 = vector.extract_strided_slice %129 {offsets = [0, 20], sizes = [16, 4], strides = [1, 1]} : vector<16x24xf32> to vector<16x4xf32>
    %cst_74 = arith.constant dense<0.000000e+00> : vector<16x16xf32>
    %151 = tpu.matmul %148, %149, %cst_74 {dimension_numbers = #tpu.dot_dimension_numbers<[1], [1], [0], [0], [0, 0, 1, 0], [], []>} : vector<16x4xf32>, vector<16x4xf32>, vector<16x16xf32> -> vector<16x16xf32>
    %cst_75 = arith.constant 5.000000e-01 : f32
    %152 = vector.broadcast %cst_75 : f32 to vector<16x16xf32>
    %153 = arith.mulf %151, %152 : vector<16x16xf32>
    %154 = arith.addf %153, %1 : vector<16x16xf32>
    %cst_76 = arith.constant dense<0xFF800000> : vector<16xf32>
    %155 = vector.multi_reduction <maximumf>, %154, %cst_76 [1] : vector<16x16xf32> to vector<16xf32>
    %156 = vector.shape_cast %155 : vector<16xf32> to vector<16x1xf32>
    %157 = vector.broadcast %156 : vector<16x1xf32> to vector<16x16xf32>
    %158 = arith.subf %154, %157 : vector<16x16xf32>
    %159 = math.exp %158 : vector<16x16xf32>
    %cst_77 = arith.constant dense<0.000000e+00> : vector<16xf32>
    %160 = vector.multi_reduction <add>, %159, %cst_77 [1] : vector<16x16xf32> to vector<16xf32>
    %161 = vector.shape_cast %160 : vector<16xf32> to vector<16x1xf32>
    %162 = tpu.reciprocal %161 {approx = true} : vector<16x1xf32> -> vector<16x1xf32>
    %163 = vector.broadcast %162 : vector<16x1xf32> to vector<16x16xf32>
    %164 = arith.mulf %159, %163 : vector<16x16xf32>
    %cst_78 = arith.constant dense<0.000000e+00> : vector<16x4xf32>
    %165 = tpu.matmul %164, %150, %cst_78 {dimension_numbers = #tpu.dot_dimension_numbers<[1], [0], [0], [1], [0, 0, 1, 1], [], []>} : vector<16x16xf32>, vector<16x4xf32>, vector<16x4xf32> -> vector<16x4xf32>
    %166 = tpu.concatenate %147, %165 in 1 : vector<16x4xf32>, vector<16x4xf32> -> vector<16x8xf32>
    %c1_79 = arith.constant 1 : index
    %c0_80 = arith.constant 0 : index
    %c0_81 = arith.constant 0 : index
    %167 = vector.load %arg5[%c1_79, %c0_80, %c0_81] : memref<2x8x8xf32, #tpu.memory_space<vmem>>, vector<1x8x8xf32>
    %168 = vector.shape_cast %167 : vector<1x8x8xf32> to vector<8x8xf32>
    %cst_82 = arith.constant dense<0.000000e+00> : vector<16x8xf32>
    %169 = tpu.matmul %166, %168, %cst_82 {dimension_numbers = #tpu.dot_dimension_numbers<[1], [0], [0], [1], [0, 0, 1, 1], [], []>} : vector<16x8xf32>, vector<8x8xf32>, vector<16x8xf32> -> vector<16x8xf32>
    %c1_83 = arith.constant 1 : index
    %c0_84 = arith.constant 0 : index
    %c0_85 = arith.constant 0 : index
    %170 = vector.load %arg6[%c1_83, %c0_84, %c0_85] : memref<2x1x8xf32, #tpu.memory_space<vmem>>, vector<1x1x8xf32>
    %171 = vector.shape_cast %170 : vector<1x1x8xf32> to vector<1x8xf32>
    %172 = vector.broadcast %171 : vector<1x8xf32> to vector<16x8xf32>
    %173 = arith.addf %169, %172 : vector<16x8xf32>
    %174 = arith.addf %122, %173 : vector<16x8xf32>
    %c1_86 = arith.constant 1 : index
    %c0_87 = arith.constant 0 : index
    %c0_88 = arith.constant 0 : index
    %175 = vector.load %arg7[%c1_86, %c0_87, %c0_88] : memref<2x1x8xf32, #tpu.memory_space<vmem>>, vector<1x1x8xf32>
    %176 = vector.shape_cast %175 : vector<1x1x8xf32> to vector<1x8xf32>
    %c1_89 = arith.constant 1 : index
    %c0_90 = arith.constant 0 : index
    %c0_91 = arith.constant 0 : index
    %177 = vector.load %arg8[%c1_89, %c0_90, %c0_91] : memref<2x1x8xf32, #tpu.memory_space<vmem>>, vector<1x1x8xf32>
    %178 = vector.shape_cast %177 : vector<1x1x8xf32> to vector<1x8xf32>
    %cst_92 = arith.constant dense<0.000000e+00> : vector<16xf32>
    %179 = vector.multi_reduction <add>, %174, %cst_92 [1] : vector<16x8xf32> to vector<16xf32>
    %180 = vector.shape_cast %179 : vector<16xf32> to vector<16x1xf32>
    %cst_93 = arith.constant 8.000000e+00 : f32
    %181 = vector.broadcast %cst_93 : f32 to vector<16x1xf32>
    %182 = arith.divf %180, %181 : vector<16x1xf32>
    %183 = vector.broadcast %182 : vector<16x1xf32> to vector<16x8xf32>
    %184 = arith.subf %174, %183 : vector<16x8xf32>
    %185 = arith.mulf %184, %184 : vector<16x8xf32>
    %cst_94 = arith.constant dense<0.000000e+00> : vector<16xf32>
    %186 = vector.multi_reduction <add>, %185, %cst_94 [1] : vector<16x8xf32> to vector<16xf32>
    %187 = vector.shape_cast %186 : vector<16xf32> to vector<16x1xf32>
    %cst_95 = arith.constant 8.000000e+00 : f32
    %188 = vector.broadcast %cst_95 : f32 to vector<16x1xf32>
    %189 = arith.divf %187, %188 : vector<16x1xf32>
    %190 = vector.broadcast %182 : vector<16x1xf32> to vector<16x8xf32>
    %191 = arith.subf %174, %190 : vector<16x8xf32>
    %cst_96 = arith.constant 9.99999974E-6 : f32
    %192 = vector.broadcast %cst_96 : f32 to vector<16x1xf32>
    %193 = arith.addf %189, %192 : vector<16x1xf32>
    %194 = math.rsqrt %193 : vector<16x1xf32>
    %195 = vector.broadcast %194 : vector<16x1xf32> to vector<16x8xf32>
    %196 = arith.mulf %191, %195 : vector<16x8xf32>
    %197 = vector.broadcast %176 : vector<1x8xf32> to vector<16x8xf32>
    %198 = arith.mulf %196, %197 : vector<16x8xf32>
    %199 = vector.broadcast %178 : vector<1x8xf32> to vector<16x8xf32>
    %200 = arith.addf %198, %199 : vector<16x8xf32>
    %c1_97 = arith.constant 1 : index
    %c0_98 = arith.constant 0 : index
    %c0_99 = arith.constant 0 : index
    %201 = vector.load %arg9[%c1_97, %c0_98, %c0_99] : memref<2x8x32xf32, #tpu.memory_space<vmem>>, vector<1x8x32xf32>
    %202 = vector.shape_cast %201 : vector<1x8x32xf32> to vector<8x32xf32>
    %cst_100 = arith.constant dense<0.000000e+00> : vector<16x32xf32>
    %203 = tpu.matmul %200, %202, %cst_100 {dimension_numbers = #tpu.dot_dimension_numbers<[1], [0], [0], [1], [0, 0, 1, 1], [], []>} : vector<16x8xf32>, vector<8x32xf32>, vector<16x32xf32> -> vector<16x32xf32>
    %c1_101 = arith.constant 1 : index
    %c0_102 = arith.constant 0 : index
    %c0_103 = arith.constant 0 : index
    %204 = vector.load %arg10[%c1_101, %c0_102, %c0_103] : memref<2x1x32xf32, #tpu.memory_space<vmem>>, vector<1x1x32xf32>
    %205 = vector.shape_cast %204 : vector<1x1x32xf32> to vector<1x32xf32>
    %206 = vector.broadcast %205 : vector<1x32xf32> to vector<16x32xf32>
    %207 = arith.addf %203, %206 : vector<16x32xf32>
    %cst_104 = arith.constant 0.000000e+00 : f32
    %208 = vector.broadcast %cst_104 : f32 to vector<16x32xf32>
    %209 = arith.maximumf %207, %208 : vector<16x32xf32>
    %c1_105 = arith.constant 1 : index
    %c0_106 = arith.constant 0 : index
    %c0_107 = arith.constant 0 : index
    %210 = vector.load %arg11[%c1_105, %c0_106, %c0_107] : memref<2x32x8xf32, #tpu.memory_space<vmem>>, vector<1x32x8xf32>
    %211 = vector.shape_cast %210 : vector<1x32x8xf32> to vector<32x8xf32>
    %cst_108 = arith.constant dense<0.000000e+00> : vector<16x8xf32>
    %212 = tpu.matmul %209, %211, %cst_108 {dimension_numbers = #tpu.dot_dimension_numbers<[1], [0], [0], [1], [0, 0, 1, 1], [], []>} : vector<16x32xf32>, vector<32x8xf32>, vector<16x8xf32> -> vector<16x8xf32>
    %c1_109 = arith.constant 1 : index
    %c0_110 = arith.constant 0 : index
    %c0_111 = arith.constant 0 : index
    %213 = vector.load %arg12[%c1_109, %c0_110, %c0_111] : memref<2x1x8xf32, #tpu.memory_space<vmem>>, vector<1x1x8xf32>
    %214 = vector.shape_cast %213 : vector<1x1x8xf32> to vector<1x8xf32>
    %215 = vector.broadcast %214 : vector<1x8xf32> to vector<16x8xf32>
    %216 = arith.addf %212, %215 : vector<16x8xf32>
    %217 = arith.addf %200, %216 : vector<16x8xf32>
    %c1_112 = arith.constant 1 : index
    %c0_113 = arith.constant 0 : index
    %c0_114 = arith.constant 0 : index
    %218 = vector.load %arg13[%c1_112, %c0_113, %c0_114] : memref<2x1x8xf32, #tpu.memory_space<vmem>>, vector<1x1x8xf32>
    %219 = vector.shape_cast %218 : vector<1x1x8xf32> to vector<1x8xf32>
    %c1_115 = arith.constant 1 : index
    %c0_116 = arith.constant 0 : index
    %c0_117 = arith.constant 0 : index
    %220 = vector.load %arg14[%c1_115, %c0_116, %c0_117] : memref<2x1x8xf32, #tpu.memory_space<vmem>>, vector<1x1x8xf32>
    %221 = vector.shape_cast %220 : vector<1x1x8xf32> to vector<1x8xf32>
    %cst_118 = arith.constant dense<0.000000e+00> : vector<16xf32>
    %222 = vector.multi_reduction <add>, %217, %cst_118 [1] : vector<16x8xf32> to vector<16xf32>
    %223 = vector.shape_cast %222 : vector<16xf32> to vector<16x1xf32>
    %cst_119 = arith.constant 8.000000e+00 : f32
    %224 = vector.broadcast %cst_119 : f32 to vector<16x1xf32>
    %225 = arith.divf %223, %224 : vector<16x1xf32>
    %226 = vector.broadcast %225 : vector<16x1xf32> to vector<16x8xf32>
    %227 = arith.subf %217, %226 : vector<16x8xf32>
    %228 = arith.mulf %227, %227 : vector<16x8xf32>
    %cst_120 = arith.constant dense<0.000000e+00> : vector<16xf32>
    %229 = vector.multi_reduction <add>, %228, %cst_120 [1] : vector<16x8xf32> to vector<16xf32>
    %230 = vector.shape_cast %229 : vector<16xf32> to vector<16x1xf32>
    %cst_121 = arith.constant 8.000000e+00 : f32
    %231 = vector.broadcast %cst_121 : f32 to vector<16x1xf32>
    %232 = arith.divf %230, %231 : vector<16x1xf32>
    %233 = vector.broadcast %225 : vector<16x1xf32> to vector<16x8xf32>
    %234 = arith.subf %217, %233 : vector<16x8xf32>
    %cst_122 = arith.constant 9.99999974E-6 : f32
    %235 = vector.broadcast %cst_122 : f32 to vector<16x1xf32>
    %236 = arith.addf %232, %235 : vector<16x1xf32>
    %237 = math.rsqrt %236 : vector<16x1xf32>
    %238 = vector.broadcast %237 : vector<16x1xf32> to vector<16x8xf32>
    %239 = arith.mulf %234, %238 : vector<16x8xf32>
    %240 = vector.broadcast %219 : vector<1x8xf32> to vector<16x8xf32>
    %241 = arith.mulf %239, %240 : vector<16x8xf32>
    %242 = vector.broadcast %221 : vector<1x8xf32> to vector<16x8xf32>
    %243 = arith.addf %241, %242 : vector<16x8xf32>
    %c0_123 = arith.constant 0 : index
    %c0_124 = arith.constant 0 : index
    %244 = vector.load %arg15[%c0_123, %c0_124] : memref<8x128xf32, #tpu.memory_space<vmem>>, vector<8x128xf32>
    %cst_125 = arith.constant dense<0.000000e+00> : vector<16x128xf32>
    %245 = tpu.matmul %243, %244, %cst_125 {dimension_numbers = #tpu.dot_dimension_numbers<[1], [0], [0], [1], [0, 0, 1, 1], [], []>} : vector<16x8xf32>, vector<8x128xf32>, vector<16x128xf32> -> vector<16x128xf32>
    %c0_126 = arith.constant 0 : index
    %c0_127 = arith.constant 0 : index
    %246 = vector.load %arg16[%c0_126, %c0_127] : memref<16x128xf32, #tpu.memory_space<vmem>>, vector<16x128xf32>
    %247 = arith.mulf %245, %246 : vector<16x128xf32>
    %c0_128 = arith.constant 0 : index
    %c0_129 = arith.constant 0 : index
    %248 = vector.load %arg17[%c0_128, %c0_129] : memref<128x16xf32, #tpu.memory_space<vmem>>, vector<128x16xf32>
    %cst_130 = arith.constant dense<0.000000e+00> : vector<16x16xf32>
    %249 = tpu.matmul %247, %248, %cst_130 {dimension_numbers = #tpu.dot_dimension_numbers<[1], [0], [0], [1], [0, 0, 1, 1], [], []>} : vector<16x128xf32>, vector<128x16xf32>, vector<16x16xf32> -> vector<16x16xf32>
    %c0_131 = arith.constant 0 : index
    %c0_132 = arith.constant 0 : index
    %250 = vector.load %arg18[%c0_131, %c0_132] : memref<2x16xf32, #tpu.memory_space<vmem>>, vector<2x16xf32>
    %cst_133 = arith.constant dense<0.000000e+00> : vector<2x16xf32>
    %251 = tpu.matmul %250, %249, %cst_133 {dimension_numbers = #tpu.dot_dimension_numbers<[1], [0], [0], [1], [0, 0, 1, 1], [], []>} : vector<2x16xf32>, vector<16x16xf32>, vector<2x16xf32> -> vector<2x16xf32>
    %cst_134 = arith.constant 0.000000e+00 : f32
    %252 = vector.broadcast %cst_134 : f32 to vector<2x16xf32>
    %253 = arith.cmpf oge, %251, %252 : vector<2x16xf32>
    %cst_135 = arith.constant 0.00999999977 : f32
    %254 = vector.broadcast %cst_135 : f32 to vector<2x16xf32>
    %255 = arith.mulf %254, %251 : vector<2x16xf32>
    %256 = arith.select %253, %251, %255 : vector<2x16xi1>, vector<2x16xf32>
    %c0_136 = arith.constant 0 : index
    %c0_137 = arith.constant 0 : index
    %257 = vector.load %arg19[%c0_136, %c0_137] : memref<16x4xf32, #tpu.memory_space<vmem>>, vector<16x4xf32>
    %cst_138 = arith.constant dense<0.000000e+00> : vector<2x4xf32>
    %258 = tpu.matmul %256, %257, %cst_138 {dimension_numbers = #tpu.dot_dimension_numbers<[1], [0], [0], [1], [0, 0, 1, 1], [], []>} : vector<2x16xf32>, vector<16x4xf32>, vector<2x4xf32> -> vector<2x4xf32>
    %c0_139 = arith.constant 0 : index
    %c0_140 = arith.constant 0 : index
    %259 = vector.load %arg20[%c0_139, %c0_140] : memref<2x4xf32, #tpu.memory_space<vmem>>, vector<2x4xf32>
    tpu.vector_store %arg20[%c0_139, %c0_140], %258 {strides = array<i32>} : memref<2x4xf32, #tpu.memory_space<vmem>>, vector<2x4xf32>,
    return
  }
  func.func @transform_0(%arg0: i32) -> (i32, i32) {
    %c0_i32 = arith.constant 0 : i32
    %c0_i32_0 = arith.constant 0 : i32
    %c0_i32_1 = arith.constant 0 : i32
    return %c0_i32, %c0_i32_0 : i32, i32
  }
  func.func @transform_1(%arg0: i32) -> (i32, i32) {
    %c0_i32 = arith.constant 0 : i32
    %c0_i32_0 = arith.constant 0 : i32
    %c0_i32_1 = arith.constant 0 : i32
    return %c0_i32, %c0_i32_0 : i32, i32
  }
  func.func @transform_2(%arg0: i32) -> (i32, i32, i32) {
    %c0_i32 = arith.constant 0 : i32
    %c0_i32_0 = arith.constant 0 : i32
    %c0_i32_1 = arith.constant 0 : i32
    %c0_i32_2 = arith.constant 0 : i32
    return %c0_i32, %c0_i32_0, %c0_i32_1 : i32, i32, i32
  }
  func.func @transform_3(%arg0: i32) -> (i32, i32, i32) {
    %c0_i32 = arith.constant 0 : i32
    %c0_i32_0 = arith.constant 0 : i32
    %c0_i32_1 = arith.constant 0 : i32
    %c0_i32_2 = arith.constant 0 : i32
    return %c0_i32, %c0_i32_0, %c0_i32_1 : i32, i32, i32
  }
  func.func @transform_4(%arg0: i32) -> (i32, i32, i32) {
    %c0_i32 = arith.constant 0 : i32
    %c0_i32_0 = arith.constant 0 : i32
    %c0_i32_1 = arith.constant 0 : i32
    %c0_i32_2 = arith.constant 0 : i32
    return %c0_i32, %c0_i32_0, %c0_i32_1 : i32, i32, i32
  }
  func.func @transform_5(%arg0: i32) -> (i32, i32, i32) {
    %c0_i32 = arith.constant 0 : i32
    %c0_i32_0 = arith.constant 0 : i32
    %c0_i32_1 = arith.constant 0 : i32
    %c0_i32_2 = arith.constant 0 : i32
    return %c0_i32, %c0_i32_0, %c0_i32_1 : i32, i32, i32
  }
  func.func @transform_6(%arg0: i32) -> (i32, i32, i32) {
    %c0_i32 = arith.constant 0 : i32
    %c0_i32_0 = arith.constant 0 : i32
    %c0_i32_1 = arith.constant 0 : i32
    %c0_i32_2 = arith.constant 0 : i32
    return %c0_i32, %c0_i32_0, %c0_i32_1 : i32, i32, i32
  }
  func.func @transform_7(%arg0: i32) -> (i32, i32, i32) {
    %c0_i32 = arith.constant 0 : i32
    %c0_i32_0 = arith.constant 0 : i32
    %c0_i32_1 = arith.constant 0 : i32
    %c0_i32_2 = arith.constant 0 : i32
    return %c0_i32, %c0_i32_0, %c0_i32_1 : i32, i32, i32
  }
  func.func @transform_8(%arg0: i32) -> (i32, i32, i32) {
    %c0_i32 = arith.constant 0 : i32
    %c0_i32_0 = arith.constant 0 : i32
    %c0_i32_1 = arith.constant 0 : i32
    %c0_i32_2 = arith.constant 0 : i32
    return %c0_i32, %c0_i32_0, %c0_i32_1 : i32, i32, i32
  }
  func.func @transform_9(%arg0: i32) -> (i32, i32, i32) {
    %c0_i32 = arith.constant 0 : i32
    %c0_i32_0 = arith.constant 0 : i32
    %c0_i32_1 = arith.constant 0 : i32
    %c0_i32_2 = arith.constant 0 : i32
    return %c0_i32, %c0_i32_0, %c0_i32_1 : i32, i32, i32
  }
  func.func @transform_10(%arg0: i32) -> (i32, i32, i32) {
    %c0_i32 = arith.constant 0 : i32
    %c0_i32_0 = arith.constant 0 : i32
    %c0_i32_1 = arith.constant 0 : i32
    %c0_i32_2 = arith.constant 0 : i32
    return %c0_i32, %c0_i32_0, %c0_i32_1 : i32, i32, i32
  }
  func.func @transform_11(%arg0: i32) -> (i32, i32, i32) {
    %c0_i32 = arith.constant 0 : i32
    %c0_i32_0 = arith.constant 0 : i32
    %c0_i32_1 = arith.constant 0 : i32
    %c0_i32_2 = arith.constant 0 : i32
    return %c0_i32, %c0_i32_0, %c0_i32_1 : i32, i32, i32
  }
  func.func @transform_12(%arg0: i32) -> (i32, i32, i32) {
    %c0_i32 = arith.constant 0 : i32
    %c0_i32_0 = arith.constant 0 : i32
    %c0_i32_1 = arith.constant 0 : i32
    %c0_i32_2 = arith.constant 0 : i32
    return %c0_i32, %c0_i32_0, %c0_i32_1 : i32, i32, i32
  }
  func.func @transform_13(%arg0: i32) -> (i32, i32, i32) {
    %c0_i32 = arith.constant 0 : i32
    %c0_i32_0 = arith.constant 0 : i32
    %c0_i32_1 = arith.constant 0 : i32
    %c0_i32_2 = arith.constant 0 : i32
    return %c0_i32, %c0_i32_0, %c0_i32_1 : i32, i32, i32
  }
  func.func @transform_14(%arg0: i32) -> (i32, i32) {
    %c0_i32 = arith.constant 0 : i32
    %c0_i32_0 = arith.constant 0 : i32
    %c0_i32_1 = arith.constant 0 : i32
    return %c0_i32, %c0_i32_0 : i32, i32
  }
  func.func @transform_15(%arg0: i32) -> (i32, i32) {
    %c0_i32 = arith.constant 0 : i32
    %c0_i32_0 = arith.constant 0 : i32
    %c0_i32_1 = arith.constant 0 : i32
    return %c0_i32, %c0_i32_0 : i32, i32
  }
  func.func @transform_16(%arg0: i32) -> (i32, i32) {
    %c0_i32 = arith.constant 0 : i32
    %c0_i32_0 = arith.constant 0 : i32
    %c0_i32_1 = arith.constant 0 : i32
    return %c0_i32, %c0_i32_0 : i32, i32
  }
  func.func @transform_17(%arg0: i32) -> (i32, i32) {
    %c0_i32 = arith.constant 0 : i32
    %c0_i32_0 = arith.constant 0 : i32
    %c0_i32_1 = arith.constant 0 : i32
    return %c0_i32, %c0_i32_0 : i32, i32
  }
  func.func @transform_18(%arg0: i32) -> (i32, i32) {
    %c0_i32 = arith.constant 0 : i32
    %c0_i32_0 = arith.constant 0 : i32
    %c0_i32_1 = arith.constant 0 : i32
    return %c0_i32, %c0_i32_0 : i32, i32
  }
  func.func @transform_19(%arg0: i32) -> (i32, i32) {
    %c0_i32 = arith.constant 0 : i32
    %c0_i32_0 = arith.constant 0 : i32
    %c0_i32_1 = arith.constant 0 : i32
    return %c0_i32, %c0_i32_0 : i32, i32
  }
}

</mosaic_0001>

<llo_original>
// kernel: tpu_custom_call.1
$region0: #{tpu_custom_call.1}
  #allocation0 [shape = 'u32[]', space=smem, size = 0x4, offset = 0x4, fixed_abs, tag = 'smem constant byte address 0x4 - core index']
  #allocation1 [shape = 'u32[144,128]{1,0:T(1,128)}', space=vmem, size = 0x12000, scoped, tag = 'internal scratch']
  %s0 = inlined_call_operand.vmem [shape: f32[16,8], index: 0, kind: input, shape index: {}]
  %s1 = inlined_call_operand.vmem [shape: f32[16,16], index: 1, kind: input, shape index: {}]
  %s2 = inlined_call_operand.vmem [shape: f32[2,8,24], index: 2, kind: input, shape index: {}]
  %s3 = inlined_call_operand.vmem [shape: f32[2,1,24], index: 3, kind: input, shape index: {}]
  %s4 = inlined_call_operand.vmem [shape: f32[2,8,8], index: 4, kind: input, shape index: {}]
  %s5 = inlined_call_operand.vmem [shape: f32[2,1,8], index: 5, kind: input, shape index: {}]
  %s6 = inlined_call_operand.vmem [shape: f32[2,1,8], index: 6, kind: input, shape index: {}]
  %s7 = inlined_call_operand.vmem [shape: f32[2,1,8], index: 7, kind: input, shape index: {}]
  %s8 = inlined_call_operand.vmem [shape: f32[2,8,32], index: 8, kind: input, shape index: {}]
  %s9 = inlined_call_operand.vmem [shape: f32[2,1,32], index: 9, kind: input, shape index: {}]
  %s10 = inlined_call_operand.vmem [shape: f32[2,32,8], index: 10, kind: input, shape index: {}]
  %s11 = inlined_call_operand.vmem [shape: f32[2,1,8], index: 11, kind: input, shape index: {}]
  %s12 = inlined_call_operand.vmem [shape: f32[2,1,8], index: 12, kind: input, shape index: {}]
  %s13 = inlined_call_operand.vmem [shape: f32[2,1,8], index: 13, kind: input, shape index: {}]
  %s14 = inlined_call_operand.vmem [shape: f32[8,128], index: 14, kind: input, shape index: {}]
  %s15 = inlined_call_operand.vmem [shape: f32[16,128], index: 15, kind: input, shape index: {}]
  %s16 = inlined_call_operand.vmem [shape: f32[128,16], index: 16, kind: input, shape index: {}]
  %s17 = inlined_call_operand.vmem [shape: f32[2,16], index: 17, kind: input, shape index: {}]
  %s18 = inlined_call_operand.vmem [shape: f32[16,4], index: 18, kind: input, shape index: {}]
  %s19 = inlined_call_operand.hbm [shape: f32[2,4], index: 19, kind: output, shape index: {}]
  %s20 = sld [smem:[#allocation0]]
  $region86: #{tpu_custom_call.1} parent=0
    _
  %s22 = ssub.s32 1, %s20
  %s23 = scalar_select 0, %s22, %s20
  $region1: #{tpu_custom_call.1} parent=0
    #allocation2 [shape = 'u8[1024]{0}', space=vmem, size = 0x400, scoped, tag = 'output window, operand 0, single buffered']
    #allocation3 [shape = 's32[1]{0}', space=sflag, size = 0x4, scoped, tag = 'scoped memory for tpu_custom_call.1']
    %24 = vsyncpa [#allocation3], 0
    // Predicated region
    $region2: #{tpu_custom_call.1} parent=1 // pred_check
      _
    $region3: #{tpu_custom_call.1} parent=1 // pred_check_branch
      %26 = sbr.rel (0) target = $region5
    $region4: #{tpu_custom_call.1} parent=1 // pred_region
      _
    $region5: #{tpu_custom_call.1} parent=1 // pred_fallthru
      _
    // Predicated region
    $region6: #{tpu_custom_call.1} parent=1 // pred_check
      _
    $region7: #{tpu_custom_call.1} parent=1 // pred_check_branch
      %28 = sbr.rel (0) target = $region9
    $region8: #{tpu_custom_call.1} parent=1 // pred_region
      _
    $region9: #{tpu_custom_call.1} parent=1 // pred_fallthru
      _
    // Predicated region
    $region10: #{tpu_custom_call.1} parent=1 // pred_check
      _
    $region11: #{tpu_custom_call.1} parent=1 // pred_check_branch
      %30 = sbr.rel (0) target = $region13
    $region12: #{tpu_custom_call.1} parent=1 // pred_region
      _
    $region13: #{tpu_custom_call.1} parent=1 // pred_fallthru
      _
    // Predicated region
    $region14: #{tpu_custom_call.1} parent=1 // pred_check
      _
    $region15: #{tpu_custom_call.1} parent=1 // pred_check_branch
      %32 = sbr.rel (0) target = $region17
    $region16: #{tpu_custom_call.1} parent=1 // pred_region
      _
    $region17: #{tpu_custom_call.1} parent=1 // pred_fallthru
      _
    // Predicated region
    $region18: #{tpu_custom_call.1} parent=1 // pred_check
      _
    $region19: #{tpu_custom_call.1} parent=1 // pred_check_branch
      %34 = sbr.rel (0) target = $region21
    $region20: #{tpu_custom_call.1} parent=1 // pred_region
      _
    $region21: #{tpu_custom_call.1} parent=1 // pred_fallthru
      _
    // Predicated region
    $region22: #{tpu_custom_call.1} parent=1 // pred_check
      _
    $region23: #{tpu_custom_call.1} parent=1 // pred_check_branch
      %36 = sbr.rel (0) target = $region25
    $region24: #{tpu_custom_call.1} parent=1 // pred_region
      _
    $region25: #{tpu_custom_call.1} parent=1 // pred_fallthru
      _
    // Predicated region
    $region26: #{tpu_custom_call.1} parent=1 // pred_check
      _
    $region27: #{tpu_custom_call.1} parent=1 // pred_check_branch
      %38 = sbr.rel (0) target = $region29
    $region28: #{tpu_custom_call.1} parent=1 // pred_region
      _
    $region29: #{tpu_custom_call.1} parent=1 // pred_fallthru
      _
    // Predicated region
    $region30: #{tpu_custom_call.1} parent=1 // pred_check
      _
    $region31: #{tpu_custom_call.1} parent=1 // pred_check_branch
      %40 = sbr.rel (0) target = $region33
    $region32: #{tpu_custom_call.1} parent=1 // pred_region
      _
    $region33: #{tpu_custom_call.1} parent=1 // pred_fallthru
      _
    // Predicated region
    $region34: #{tpu_custom_call.1} parent=1 // pred_check
      _
    $region35: #{tpu_custom_call.1} parent=1 // pred_check_branch
      %42 = sbr.rel (0) target = $region37
    $region36: #{tpu_custom_call.1} parent=1 // pred_region
      _
    $region37: #{tpu_custom_call.1} parent=1 // pred_fallthru
      _
    // Predicated region
    $region38: #{tpu_custom_call.1} parent=1 // pred_check
      _
    $region39: #{tpu_custom_call.1} parent=1 // pred_check_branch
      %44 = sbr.rel (0) target = $region41
    $region40: #{tpu_custom_call.1} parent=1 // pred_region
      _
    $region41: #{tpu_custom_call.1} parent=1 // pred_fallthru
      _
    // Predicated region
    $region42: #{tpu_custom_call.1} parent=1 // pred_check
      _
    $region43: #{tpu_custom_call.1} parent=1 // pred_check_branch
      %46 = sbr.rel (0) target = $region45
    $region44: #{tpu_custom_call.1} parent=1 // pred_region
      _
    $region45: #{tpu_custom_call.1} parent=1 // pred_fallthru
      _
    // Predicated region
    $region46: #{tpu_custom_call.1} parent=1 // pred_check
      _
    $region47: #{tpu_custom_call.1} parent=1 // pred_check_branch
      %48 = sbr.rel (0) target = $region49
    $region48: #{tpu_custom_call.1} parent=1 // pred_region
      _
    $region49: #{tpu_custom_call.1} parent=1 // pred_fallthru
      _
    // Predicated region
    $region50: #{tpu_custom_call.1} parent=1 // pred_check
      _
    $region51: #{tpu_custom_call.1} parent=1 // pred_check_branch
      %50 = sbr.rel (0) target = $region53
    $region52: #{tpu_custom_call.1} parent=1 // pred_region
      _
    $region53: #{tpu_custom_call.1} parent=1 // pred_fallthru
      _
    // Predicated region
    $region54: #{tpu_custom_call.1} parent=1 // pred_check
      _
    $region55: #{tpu_custom_call.1} parent=1 // pred_check_branch
      %52 = sbr.rel (0) target = $region57
    $region56: #{tpu_custom_call.1} parent=1 // pred_region
      _
    $region57: #{tpu_custom_call.1} parent=1 // pred_fallthru
      _
    // Predicated region
    $region58: #{tpu_custom_call.1} parent=1 // pred_check
      _
    $region59: #{tpu_custom_call.1} parent=1 // pred_check_branch
      %54 = sbr.rel (0) target = $region61
    $region60: #{tpu_custom_call.1} parent=1 // pred_region
      _
    $region61: #{tpu_custom_call.1} parent=1 // pred_fallthru
      _
    // Predicated region
    $region62: #{tpu_custom_call.1} parent=1 // pred_check
      _
    $region63: #{tpu_custom_call.1} parent=1 // pred_check_branch
      %56 = sbr.rel (0) target = $region65
    $region64: #{tpu_custom_call.1} parent=1 // pred_region
      _
    $region65: #{tpu_custom_call.1} parent=1 // pred_fallthru
      _
    // Predicated region
    $region66: #{tpu_custom_call.1} parent=1 // pred_check
      _
    $region67: #{tpu_custom_call.1} parent=1 // pred_check_branch
      %58 = sbr.rel (0) target = $region69
    $region68: #{tpu_custom_call.1} parent=1 // pred_region
      _
    $region69: #{tpu_custom_call.1} parent=1 // pred_fallthru
      _
    // Predicated region
    $region70: #{tpu_custom_call.1} parent=1 // pred_check
      _
    $region71: #{tpu_custom_call.1} parent=1 // pred_check_branch
      %60 = sbr.rel (0) target = $region73
    $region72: #{tpu_custom_call.1} parent=1 // pred_region
      _
    $region73: #{tpu_custom_call.1} parent=1 // pred_fallthru
      _
    // Predicated region
    $region74: #{tpu_custom_call.1} parent=1 // pred_check
      _
    $region75: #{tpu_custom_call.1} parent=1 // pred_check_branch
      %62 = sbr.rel (0) target = $region77
    $region76: #{tpu_custom_call.1} parent=1 // pred_region
      _
    $region77: #{tpu_custom_call.1} parent=1 // pred_fallthru
      _
    %v63 = vld [vmem:[%s0] sm:$0xff]
    %v64 = vld [vmem:[%s0 + $0x8] sm:$0xff]
    %v65 = vld [vmem:[%s1] sm:$0xff]
    %v66 = vld [vmem:[%s1 + $0x8] sm:$0xff]
    %v67 = vld [vmem:[%s2] sm:$0xff]
    %v68 = vld [vmem:[%s3] sm:$0x1]
    %v70 = vlaneseq
    %v71 = vshrl.u32 %v70, 7
    %v72 = vsub.s32 0, %v71
    %v73 = vrot.slane %v68, %v72
    %vm75 = vcmask 64512
    %v77 = vsel %vm75, %v63, 0
    %v80 = vsel %vm75, %v64, 0
    %82 = vmatprep.subr.mxu0 0.0
    %83 = vmatpush1.msra.mxu0 0.0
    %84 = vmatprep.subr.mxu0 0.0
    %85 = vmatpush1.msra.mxu0 0.0
    %86 = vmatprep.subr.mxu0 0.0
    %87 = vmatpush1.msra.mxu0 0.0
    %88 = vmatprep.subr.mxu0 0.0
    %89 = vmatpush1.msra.mxu0 0.0
    %90 = vmatprep.subr.mxu0 0.0
    %91 = vmatpush1.msra.mxu0 0.0
    %92 = vmatprep.subr.mxu0 0.0
    %93 = vmatpush1.msra.mxu0 0.0
    %94 = vmatprep.subr.mxu0 0.0
    %95 = vmatpush1.msra.mxu0 0.0
    %96 = vmatprep.subr.mxu0 0.0
    %97 = vmatpush1.msra.mxu0 0.0
    %98 = vmatprep.subr.mxu0 0.0
    %99 = vmatpush1.msra.mxu0 0.0
    %100 = vmatprep.subr.mxu0 0.0
    %101 = vmatpush1.msra.mxu0 0.0
    %102 = vmatprep.subr.mxu0 0.0
    %103 = vmatpush1.msra.mxu0 0.0
    %104 = vmatprep.subr.mxu0 0.0
    %105 = vmatpush1.msra.mxu0 0.0
    %106 = vmatprep.subr.mxu0 0.0
    %107 = vmatpush1.msra.mxu0 0.0
    %108 = vmatprep.subr.mxu0 0.0
    %109 = vmatpush1.msra.mxu0 0.0
    %110 = vmatprep.subr.mxu0 0.0
    %111 = vmatpush1.msra.mxu0 0.0
    %112 = vmatprep.subr.mxu0 0.0
    %113 = vmatpush1.msra.mxu0 %v67
    %114 = vmatprep.subr.mxu0 0.0
    %115 = vmatpush2.msra.mxu0 0.0
    %116 = vmatprep.subr.mxu0 0.0
    %117 = vmatpush2.msra.mxu0 0.0
    %118 = vmatprep.subr.mxu0 0.0
    %119 = vmatpush2.msra.mxu0 0.0
    %120 = vmatprep.subr.mxu0 0.0
    %121 = vmatpush2.msra.mxu0 0.0
    %122 = vmatprep.subr.mxu0 0.0
    %123 = vmatpush2.msra.mxu0 0.0
    %124 = vmatprep.subr.mxu0 0.0
    %125 = vmatpush2.msra.mxu0 0.0
    %126 = vmatprep.subr.mxu0 0.0
    %127 = vmatpush2.msra.mxu0 0.0
    %128 = vmatprep.subr.mxu0 0.0
    %129 = vmatpush2.msra.mxu0 0.0
    %130 = vmatprep.subr.mxu0 0.0
    %131 = vmatpush2.msra.mxu0 0.0
    %132 = vmatprep.subr.mxu0 0.0
    %133 = vmatpush2.msra.mxu0 0.0
    %134 = vmatprep.subr.mxu0 0.0
    %135 = vmatpush2.msra.mxu0 0.0
    %136 = vmatprep.subr.mxu0 0.0
    %137 = vmatpush2.msra.mxu0 0.0
    %138 = vmatprep.subr.mxu0 0.0
    %139 = vmatpush2.msra.mxu0 0.0
    %140 = vmatprep.subr.mxu0 0.0
    %141 = vmatpush2.msra.mxu0 0.0
    %142 = vmatprep.subr.mxu0 0.0
    %143 = vmatpush2.msra.mxu0 0.0
    %144 = vmatprep.subr.mxu0 0.0
    %145 = vmatpush2.msra.mxu0 0.0
    %146 = vmatprep.mubr.f32.mxu0 0.0
    %147 = vmatmul.mubr.f32.gmra.mxu0 %v77
    %v148 = vpop.f32.mrf.mxu0
    %v149 = vadd.f32 %v73, %v148
    %v150 = vpop.f32.mrf.mxu0
    %151 = vmatprep.mubr.f32.mxu0 0.0
    %152 = vmatmul.mubr.f32.gmra.mxu0 %v80
    %v153 = vpop.f32.mrf.mxu0
    %v154 = vadd.f32 %v73, %v153
    %v155 = vpop.f32.mrf.mxu0
    %156 = vdwg.mxu0
    %159 = vrot.lane.b32.xlu0 %v149, 120
    %v160 = vpop.permute.xlu0 %159
    %161 = vrot.lane.b32.xlu0 %v154, 120
    %v162 = vpop.permute.xlu0 %161
    %vm163 = vcmask 31744
    %v164 = vsel %vm163, %v149, 0
    %v166 = vsel %vm163, %v154, 0
    %v168 = vsel %vm163, %v160, 0
    %v170 = vsel %vm163, %v162, 0
    %172 = vmatprep.subr.mxu0 0.0
    %173 = vmatpush1.xpose.msra.mxu0 0.0
    %174 = vmatprep.subr.mxu0 0.0
    %175 = vmatpush1.xpose.msra.mxu0 0.0
    %176 = vmatprep.subr.mxu0 0.0
    %177 = vmatpush1.xpose.msra.mxu0 0.0
    %178 = vmatprep.subr.mxu0 0.0
    %179 = vmatpush1.xpose.msra.mxu0 0.0
    %180 = vmatprep.subr.mxu0 0.0
    %181 = vmatpush1.xpose.msra.mxu0 0.0
    %182 = vmatprep.subr.mxu0 0.0
    %183 = vmatpush1.xpose.msra.mxu0 0.0
    %184 = vmatprep.subr.mxu0 0.0
    %185 = vmatpush1.xpose.msra.mxu0 0.0
    %186 = vmatprep.subr.mxu0 0.0
    %187 = vmatpush1.xpose.msra.mxu0 0.0
    %188 = vmatprep.subr.mxu0 0.0
    %189 = vmatpush1.xpose.msra.mxu0 0.0
    %190 = vmatprep.subr.mxu0 0.0
    %191 = vmatpush1.xpose.msra.mxu0 0.0
    %192 = vmatprep.subr.mxu0 0.0
    %193 = vmatpush1.xpose.msra.mxu0 0.0
    %194 = vmatprep.subr.mxu0 0.0
    %195 = vmatpush1.xpose.msra.mxu0 0.0
    %196 = vmatprep.subr.mxu0 0.0
    %197 = vmatpush1.xpose.msra.mxu0 0.0
    %198 = vmatprep.subr.mxu0 0.0
    %199 = vmatpush1.xpose.msra.mxu0 0.0
    %200 = vmatprep.subr.mxu0 0.0
    %201 = vmatpush1.xpose.msra.mxu0 %v170
    %202 = vmatprep.subr.mxu0 0.0
    %203 = vmatpush1.xpose.msra.mxu0 %v168
    %204 = vmatprep.subr.mxu0 0.0
    %205 = vmatpush2.xpose.msra.mxu0 0.0
    %206 = vmatprep.subr.mxu0 0.0
    %207 = vmatpush2.xpose.msra.mxu0 0.0
    %208 = vmatprep.subr.mxu0 0.0
    %209 = vmatpush2.xpose.msra.mxu0 0.0
    %210 = vmatprep.subr.mxu0 0.0
    %211 = vmatpush2.xpose.msra.mxu0 0.0
    %212 = vmatprep.subr.mxu0 0.0
    %213 = vmatpush2.xpose.msra.mxu0 0.0
    %214 = vmatprep.subr.mxu0 0.0
    %215 = vmatpush2.xpose.msra.mxu0 0.0
    %216 = vmatprep.subr.mxu0 0.0
    %217 = vmatpush2.xpose.msra.mxu0 0.0
    %218 = vmatprep.subr.mxu0 0.0
    %219 = vmatpush2.xpose.msra.mxu0 0.0
    %220 = vmatprep.subr.mxu0 0.0
    %221 = vmatpush2.xpose.msra.mxu0 0.0
    %222 = vmatprep.subr.mxu0 0.0
    %223 = vmatpush2.xpose.msra.mxu0 0.0
    %224 = vmatprep.subr.mxu0 0.0
    %225 = vmatpush2.xpose.msra.mxu0 0.0
    %226 = vmatprep.subr.mxu0 0.0
    %227 = vmatpush2.xpose.msra.mxu0 0.0
    %228 = vmatprep.subr.mxu0 0.0
    %229 = vmatpush2.xpose.msra.mxu0 0.0
    %230 = vmatprep.subr.mxu0 0.0
    %231 = vmatpush2.xpose.msra.mxu0 0.0
    %232 = vmatprep.subr.mxu0 0.0
    %233 = vmatpush2.xpose.msra.mxu0 0.0
    %234 = vmatprep.subr.mxu0 0.0
    %235 = vmatpush2.xpose.msra.mxu0 0.0
    %236 = vmatprep.mubr.f32.mxu0 0.0
    %237 = vmatmul.mubr.f32.gmra.mxu0 %v164
    %v238 = vpop.f32.mrf.mxu0
    %v239 = vadd.f32 0.0, %v238
    %v240 = vpop.f32.mrf.mxu0
    %241 = vmatprep.mubr.f32.mxu0 0.0
    %242 = vmatmul.mubr.f32.gmra.mxu0 %v166
    %v243 = vpop.f32.mrf.mxu0
    %v244 = vadd.f32 0.0, %v243
    %v245 = vpop.f32.mrf.mxu0
    %246 = vdwg.mxu0
    %v247 = vmul.f32 %v239, 0.5
    %v248 = vmul.f32 %v244, 0.5
    %v249 = vadd.f32 %v247, %v65
    %v250 = vadd.f32 %v248, %v66
    %vm251 = vcmask 130048
    %v252 = vsel %vm251, %v249, -inf
    %253 = vmax.xlane.f32.xlu0 %v252
    %v254 = vpop.xlane.xlu0 %253
    %v255 = vsel %vm251, %v250, -inf
    %256 = vmax.xlane.f32.xlu0 %v255
    %v257 = vpop.xlane.xlu0 %256
    %v258 = vsub.f32 %v249, %v254
    %v259 = vsub.f32 %v250, %v257
    %v260 = vmul.f32 %v258, 1.442695
    %v261 = vpow.pop %v260
    %v262 = vmul.f32 %v259, 1.442695
    %v263 = vpow.pop %v262
    %v264 = vsel %vm251, %v261, 0.0
    %265 = vadd.xlane.f32.xlu0 %v264
    %v266 = vpop.xlane.xlu0 %265
    %v267 = vsel %vm251, %v263, 0.0
    %268 = vadd.xlane.f32.xlu0 %v267
    %v269 = vpop.xlane.xlu0 %268
    %v270 = vrcp.pop %v266
    %v271 = vrcp.pop %v269
    %v272 = vmul.f32 %v261, %v270
    %v273 = vmul.f32 %v263, %v271
    %274 = vrot.lane.b32.xlu0 %v149, 112
    %v275 = vpop.permute.xlu0 %274
    %276 = vrot.lane.b32.xlu0 %v154, 112
    %v277 = vpop.permute.xlu0 %276
    %v281 = vsel %vm251, %v272, 0
    %v284 = vsel %vm251, %v273, 0
    %286 = vmatprep.subr.mxu0 0.0
    %287 = vmatpush1.msra.mxu0 0.0
    %288 = vmatprep.subr.mxu0 0.0
    %289 = vmatpush1.msra.mxu0 0.0
    %290 = vmatprep.subr.mxu0 0.0
    %291 = vmatpush1.msra.mxu0 0.0
    %292 = vmatprep.subr.mxu0 0.0
    %293 = vmatpush1.msra.mxu0 0.0
    %294 = vmatprep.subr.mxu0 0.0
    %295 = vmatpush1.msra.mxu0 0.0
    %296 = vmatprep.subr.mxu0 0.0
    %297 = vmatpush1.msra.mxu0 0.0
    %298 = vmatprep.subr.mxu0 0.0
    %299 = vmatpush1.msra.mxu0 0.0
    %300 = vmatprep.subr.mxu0 0.0
    %301 = vmatpush1.msra.mxu0 0.0
    %302 = vmatprep.subr.mxu0 0.0
    %303 = vmatpush1.msra.mxu0 0.0
    %304 = vmatprep.subr.mxu0 0.0
    %305 = vmatpush1.msra.mxu0 0.0
    %306 = vmatprep.subr.mxu0 0.0
    %307 = vmatpush1.msra.mxu0 0.0
    %308 = vmatprep.subr.mxu0 0.0
    %309 = vmatpush1.msra.mxu0 0.0
    %310 = vmatprep.subr.mxu0 0.0
    %311 = vmatpush1.msra.mxu0 0.0
    %312 = vmatprep.subr.mxu0 0.0
    %313 = vmatpush1.msra.mxu0 0.0
    %314 = vmatprep.subr.mxu0 0.0
    %315 = vmatpush1.msra.mxu0 %v277
    %316 = vmatprep.subr.mxu0 0.0
    %317 = vmatpush1.msra.mxu0 %v275
    %318 = vmatprep.subr.mxu0 0.0
    %319 = vmatpush2.msra.mxu0 0.0
    %320 = vmatprep.subr.mxu0 0.0
    %321 = vmatpush2.msra.mxu0 0.0
    %322 = vmatprep.subr.mxu0 0.0
    %323 = vmatpush2.msra.mxu0 0.0
    %324 = vmatprep.subr.mxu0 0.0
    %325 = vmatpush2.msra.mxu0 0.0
    %326 = vmatprep.subr.mxu0 0.0
    %327 = vmatpush2.msra.mxu0 0.0
    %328 = vmatprep.subr.mxu0 0.0
    %329 = vmatpush2.msra.mxu0 0.0
    %330 = vmatprep.subr.mxu0 0.0
    %331 = vmatpush2.msra.mxu0 0.0
    %332 = vmatprep.subr.mxu0 0.0
    %333 = vmatpush2.msra.mxu0 0.0
    %334 = vmatprep.subr.mxu0 0.0
    %335 = vmatpush2.msra.mxu0 0.0
    %336 = vmatprep.subr.mxu0 0.0
    %337 = vmatpush2.msra.mxu0 0.0
    %338 = vmatprep.subr.mxu0 0.0
    %339 = vmatpush2.msra.mxu0 0.0
    %340 = vmatprep.subr.mxu0 0.0
    %341 = vmatpush2.msra.mxu0 0.0
    %342 = vmatprep.subr.mxu0 0.0
    %343 = vmatpush2.msra.mxu0 0.0
    %344 = vmatprep.subr.mxu0 0.0
    %345 = vmatpush2.msra.mxu0 0.0
    %346 = vmatprep.subr.mxu0 0.0
    %347 = vmatpush2.msra.mxu0 0.0
    %348 = vmatprep.subr.mxu0 0.0
    %349 = vmatpush2.msra.mxu0 0.0
    %350 = vmatprep.mubr.f32.mxu0 0.0
    %351 = vmatmul.mubr.f32.gmra.mxu0 %v281
    %v352 = vpop.f32.mrf.mxu0
    %v353 = vadd.f32 0.0, %v352
    %v354 = vpop.f32.mrf.mxu0
    %355 = vmatprep.mubr.f32.mxu0 0.0
    %356 = vmatmul.mubr.f32.gmra.mxu0 %v284
    %v357 = vpop.f32.mrf.mxu0
    %v358 = vadd.f32 0.0, %v357
    %v359 = vpop.f32.mrf.mxu0
    %360 = vdwg.mxu0
    %361 = vrot.lane.b32.xlu0 %v149, 124
    %v362 = vpop.permute.xlu0 %361
    %363 = vrot.lane.b32.xlu0 %v154, 124
    %v364 = vpop.permute.xlu0 %363
    %365 = vrot.lane.b32.xlu0 %v149, 116
    %v366 = vpop.permute.xlu0 %365
    %367 = vrot.lane.b32.xlu0 %v154, 116
    %v368 = vpop.permute.xlu0 %367
    %v369 = vsel %vm163, %v362, 0
    %v371 = vsel %vm163, %v364, 0
    %v373 = vsel %vm163, %v366, 0
    %v375 = vsel %vm163, %v368, 0
    %377 = vmatprep.subr.mxu0 0.0
    %378 = vmatpush1.xpose.msra.mxu0 0.0
    %379 = vmatprep.subr.mxu0 0.0
    %380 = vmatpush1.xpose.msra.mxu0 0.0
    %381 = vmatprep.subr.mxu0 0.0
    %382 = vmatpush1.xpose.msra.mxu0 0.0
    %383 = vmatprep.subr.mxu0 0.0
    %384 = vmatpush1.xpose.msra.mxu0 0.0
    %385 = vmatprep.subr.mxu0 0.0
    %386 = vmatpush1.xpose.msra.mxu0 0.0
    %387 = vmatprep.subr.mxu0 0.0
    %388 = vmatpush1.xpose.msra.mxu0 0.0
    %389 = vmatprep.subr.mxu0 0.0
    %390 = vmatpush1.xpose.msra.mxu0 0.0
    %391 = vmatprep.subr.mxu0 0.0
    %392 = vmatpush1.xpose.msra.mxu0 0.0
    %393 = vmatprep.subr.mxu0 0.0
    %394 = vmatpush1.xpose.msra.mxu0 0.0
    %395 = vmatprep.subr.mxu0 0.0
    %396 = vmatpush1.xpose.msra.mxu0 0.0
    %397 = vmatprep.subr.mxu0 0.0
    %398 = vmatpush1.xpose.msra.mxu0 0.0
    %399 = vmatprep.subr.mxu0 0.0
    %400 = vmatpush1.xpose.msra.mxu0 0.0
    %401 = vmatprep.subr.mxu0 0.0
    %402 = vmatpush1.xpose.msra.mxu0 0.0
    %403 = vmatprep.subr.mxu0 0.0
    %404 = vmatpush1.xpose.msra.mxu0 0.0
    %405 = vmatprep.subr.mxu0 0.0
    %406 = vmatpush1.xpose.msra.mxu0 %v375
    %407 = vmatprep.subr.mxu0 0.0
    %408 = vmatpush1.xpose.msra.mxu0 %v373
    %409 = vmatprep.subr.mxu0 0.0
    %410 = vmatpush2.xpose.msra.mxu0 0.0
    %411 = vmatprep.subr.mxu0 0.0
    %412 = vmatpush2.xpose.msra.mxu0 0.0
    %413 = vmatprep.subr.mxu0 0.0
    %414 = vmatpush2.xpose.msra.mxu0 0.0
    %415 = vmatprep.subr.mxu0 0.0
    %416 = vmatpush2.xpose.msra.mxu0 0.0
    %417 = vmatprep.subr.mxu0 0.0
    %418 = vmatpush2.xpose.msra.mxu0 0.0
    %419 = vmatprep.subr.mxu0 0.0
    %420 = vmatpush2.xpose.msra.mxu0 0.0
    %421 = vmatprep.subr.mxu0 0.0
    %422 = vmatpush2.xpose.msra.mxu0 0.0
    %423 = vmatprep.subr.mxu0 0.0
    %424 = vmatpush2.xpose.msra.mxu0 0.0
    %425 = vmatprep.subr.mxu0 0.0
    %426 = vmatpush2.xpose.msra.mxu0 0.0
    %427 = vmatprep.subr.mxu0 0.0
    %428 = vmatpush2.xpose.msra.mxu0 0.0
    %429 = vmatprep.subr.mxu0 0.0
    %430 = vmatpush2.xpose.msra.mxu0 0.0
    %431 = vmatprep.subr.mxu0 0.0
    %432 = vmatpush2.xpose.msra.mxu0 0.0
    %433 = vmatprep.subr.mxu0 0.0
    %434 = vmatpush2.xpose.msra.mxu0 0.0
    %435 = vmatprep.subr.mxu0 0.0
    %436 = vmatpush2.xpose.msra.mxu0 0.0
    %437 = vmatprep.subr.mxu0 0.0
    %438 = vmatpush2.xpose.msra.mxu0 0.0
    %439 = vmatprep.subr.mxu0 0.0
    %440 = vmatpush2.xpose.msra.mxu0 0.0
    %441 = vmatprep.mubr.f32.mxu0 0.0
    %442 = vmatmul.mubr.f32.gmra.mxu0 %v369
    %v443 = vpop.f32.mrf.mxu0
    %v444 = vadd.f32 0.0, %v443
    %v445 = vpop.f32.mrf.mxu0
    %446 = vmatprep.mubr.f32.mxu0 0.0
    %447 = vmatmul.mubr.f32.gmra.mxu0 %v371
    %v448 = vpop.f32.mrf.mxu0
    %v449 = vadd.f32 0.0, %v448
    %v450 = vpop.f32.mrf.mxu0
    %451 = vdwg.mxu0
    %v452 = vmul.f32 %v444, 0.5
    %v453 = vmul.f32 %v449, 0.5
    %v454 = vadd.f32 %v452, %v65
    %v455 = vadd.f32 %v453, %v66
    %v456 = vsel %vm251, %v454, -inf
    %457 = vmax.xlane.f32.xlu0 %v456
    %v458 = vpop.xlane.xlu0 %457
    %v459 = vsel %vm251, %v455, -inf
    %460 = vmax.xlane.f32.xlu0 %v459
    %v461 = vpop.xlane.xlu0 %460
    %v462 = vsub.f32 %v454, %v458
    %v463 = vsub.f32 %v455, %v461
    %v464 = vmul.f32 %v462, 1.442695
    %v465 = vpow.pop %v464
    %v466 = vmul.f32 %v463, 1.442695
    %v467 = vpow.pop %v466
    %v468 = vsel %vm251, %v465, 0.0
    %469 = vadd.xlane.f32.xlu0 %v468
    %v470 = vpop.xlane.xlu0 %469
    %v471 = vsel %vm251, %v467, 0.0
    %472 = vadd.xlane.f32.xlu0 %v471
    %v473 = vpop.xlane.xlu0 %472
    %v474 = vrcp.pop %v470
    %v475 = vrcp.pop %v473
    %v476 = vmul.f32 %v465, %v474
    %v477 = vmul.f32 %v467, %v475
    %478 = vrot.lane.b32.xlu0 %v149, 108
    %v479 = vpop.permute.xlu0 %478
    %480 = vrot.lane.b32.xlu0 %v154, 108
    %v481 = vpop.permute.xlu0 %480
    %v485 = vsel %vm251, %v476, 0
    %v488 = vsel %vm251, %v477, 0
    %490 = vmatprep.subr.mxu0 0.0
    %491 = vmatpush1.msra.mxu0 0.0
    %492 = vmatprep.subr.mxu0 0.0
    %493 = vmatpush1.msra.mxu0 0.0
    %494 = vmatprep.subr.mxu0 0.0
    %495 = vmatpush1.msra.mxu0 0.0
    %496 = vmatprep.subr.mxu0 0.0
    %497 = vmatpush1.msra.mxu0 0.0
    %498 = vmatprep.subr.mxu0 0.0
    %499 = vmatpush1.msra.mxu0 0.0
    %500 = vmatprep.subr.mxu0 0.0
    %501 = vmatpush1.msra.mxu0 0.0
    %502 = vmatprep.subr.mxu0 0.0
    %503 = vmatpush1.msra.mxu0 0.0
    %504 = vmatprep.subr.mxu0 0.0
    %505 = vmatpush1.msra.mxu0 0.0
    %506 = vmatprep.subr.mxu0 0.0
    %507 = vmatpush1.msra.mxu0 0.0
    %508 = vmatprep.subr.mxu0 0.0
    %509 = vmatpush1.msra.mxu0 0.0
    %510 = vmatprep.subr.mxu0 0.0
    %511 = vmatpush1.msra.mxu0 0.0
    %512 = vmatprep.subr.mxu0 0.0
    %513 = vmatpush1.msra.mxu0 0.0
    %514 = vmatprep.subr.mxu0 0.0
    %515 = vmatpush1.msra.mxu0 0.0
    %516 = vmatprep.subr.mxu0 0.0
    %517 = vmatpush1.msra.mxu0 0.0
    %518 = vmatprep.subr.mxu0 0.0
    %519 = vmatpush1.msra.mxu0 %v481
    %520 = vmatprep.subr.mxu0 0.0
    %521 = vmatpush1.msra.mxu0 %v479
    %522 = vmatprep.subr.mxu0 0.0
    %523 = vmatpush2.msra.mxu0 0.0
    %524 = vmatprep.subr.mxu0 0.0
    %525 = vmatpush2.msra.mxu0 0.0
    %526 = vmatprep.subr.mxu0 0.0
    %527 = vmatpush2.msra.mxu0 0.0
    %528 = vmatprep.subr.mxu0 0.0
    %529 = vmatpush2.msra.mxu0 0.0
    %530 = vmatprep.subr.mxu0 0.0
    %531 = vmatpush2.msra.mxu0 0.0
    %532 = vmatprep.subr.mxu0 0.0
    %533 = vmatpush2.msra.mxu0 0.0
    %534 = vmatprep.subr.mxu0 0.0
    %535 = vmatpush2.msra.mxu0 0.0
    %536 = vmatprep.subr.mxu0 0.0
    %537 = vmatpush2.msra.mxu0 0.0
    %538 = vmatprep.subr.mxu0 0.0
    %539 = vmatpush2.msra.mxu0 0.0
    %540 = vmatprep.subr.mxu0 0.0
    %541 = vmatpush2.msra.mxu0 0.0
    %542 = vmatprep.subr.mxu0 0.0
    %543 = vmatpush2.msra.mxu0 0.0
    %544 = vmatprep.subr.mxu0 0.0
    %545 = vmatpush2.msra.mxu0 0.0
    %546 = vmatprep.subr.mxu0 0.0
    %547 = vmatpush2.msra.mxu0 0.0
    %548 = vmatprep.subr.mxu0 0.0
    %549 = vmatpush2.msra.mxu0 0.0
    %550 = vmatprep.subr.mxu0 0.0
    %551 = vmatpush2.msra.mxu0 0.0
    %552 = vmatprep.subr.mxu0 0.0
    %553 = vmatpush2.msra.mxu0 0.0
    %554 = vmatprep.mubr.f32.mxu0 0.0
    %555 = vmatmul.mubr.f32.gmra.mxu0 %v485
    %v556 = vpop.f32.mrf.mxu0
    %v557 = vadd.f32 0.0, %v556
    %v558 = vpop.f32.mrf.mxu0
    %559 = vmatprep.mubr.f32.mxu0 0.0
    %560 = vmatmul.mubr.f32.gmra.mxu0 %v488
    %v561 = vpop.f32.mrf.mxu0
    %v562 = vadd.f32 0.0, %v561
    %v563 = vpop.f32.mrf.mxu0
    %564 = vdwg.mxu0
    %567 = vrot.lane.b32.xlu0 %v557, 4
    %v568 = vpop.permute.xlu0 %567
    %569 = vrot.lane.b32.xlu0 %v562, 4
    %v570 = vpop.permute.xlu0 %569
    %v573 = vsel %vm163, %v353, %v568
    %v574 = vsel %vm163, %v358, %v570
    %v575 = vld [vmem:[%s4] sm:$0xff]
    %v576 = vld [vmem:[%s5] sm:$0x1]
    %v578 = vlaneseq
    %v579 = vshrl.u32 %v578, 7
    %v580 = vsub.s32 0, %v579
    %v581 = vrot.slane %v576, %v580
    %v584 = vsel %vm75, %v573, 0
    %v587 = vsel %vm75, %v574, 0
    %589 = vmatprep.subr.mxu0 0.0
    %590 = vmatpush1.msra.mxu0 0.0
    %591 = vmatprep.subr.mxu0 0.0
    %592 = vmatpush1.msra.mxu0 0.0
    %593 = vmatprep.subr.mxu0 0.0
    %594 = vmatpush1.msra.mxu0 0.0
    %595 = vmatprep.subr.mxu0 0.0
    %596 = vmatpush1.msra.mxu0 0.0
    %597 = vmatprep.subr.mxu0 0.0
    %598 = vmatpush1.msra.mxu0 0.0
    %599 = vmatprep.subr.mxu0 0.0
    %600 = vmatpush1.msra.mxu0 0.0
    %601 = vmatprep.subr.mxu0 0.0
    %602 = vmatpush1.msra.mxu0 0.0
    %603 = vmatprep.subr.mxu0 0.0
    %604 = vmatpush1.msra.mxu0 0.0
    %605 = vmatprep.subr.mxu0 0.0
    %606 = vmatpush1.msra.mxu0 0.0
    %607 = vmatprep.subr.mxu0 0.0
    %608 = vmatpush1.msra.mxu0 0.0
    %609 = vmatprep.subr.mxu0 0.0
    %610 = vmatpush1.msra.mxu0 0.0
    %611 = vmatprep.subr.mxu0 0.0
    %612 = vmatpush1.msra.mxu0 0.0
    %613 = vmatprep.subr.mxu0 0.0
    %614 = vmatpush1.msra.mxu0 0.0
    %615 = vmatprep.subr.mxu0 0.0
    %616 = vmatpush1.msra.mxu0 0.0
    %617 = vmatprep.subr.mxu0 0.0
    %618 = vmatpush1.msra.mxu0 0.0
    %619 = vmatprep.subr.mxu0 0.0
    %620 = vmatpush1.msra.mxu0 %v575
    %621 = vmatprep.subr.mxu0 0.0
    %622 = vmatpush2.msra.mxu0 0.0
    %623 = vmatprep.subr.mxu0 0.0
    %624 = vmatpush2.msra.mxu0 0.0
    %625 = vmatprep.subr.mxu0 0.0
    %626 = vmatpush2.msra.mxu0 0.0
    %627 = vmatprep.subr.mxu0 0.0
    %628 = vmatpush2.msra.mxu0 0.0
    %629 = vmatprep.subr.mxu0 0.0
    %630 = vmatpush2.msra.mxu0 0.0
    %631 = vmatprep.subr.mxu0 0.0
    %632 = vmatpush2.msra.mxu0 0.0
    %633 = vmatprep.subr.mxu0 0.0
    %634 = vmatpush2.msra.mxu0 0.0
    %635 = vmatprep.subr.mxu0 0.0
    %636 = vmatpush2.msra.mxu0 0.0
    %637 = vmatprep.subr.mxu0 0.0
    %638 = vmatpush2.msra.mxu0 0.0
    %639 = vmatprep.subr.mxu0 0.0
    %640 = vmatpush2.msra.mxu0 0.0
    %641 = vmatprep.subr.mxu0 0.0
    %642 = vmatpush2.msra.mxu0 0.0
    %643 = vmatprep.subr.mxu0 0.0
    %644 = vmatpush2.msra.mxu0 0.0
    %645 = vmatprep.subr.mxu0 0.0
    %646 = vmatpush2.msra.mxu0 0.0
    %647 = vmatprep.subr.mxu0 0.0
    %648 = vmatpush2.msra.mxu0 0.0
    %649 = vmatprep.subr.mxu0 0.0
    %650 = vmatpush2.msra.mxu0 0.0
    %651 = vmatprep.subr.mxu0 0.0
    %652 = vmatpush2.msra.mxu0 0.0
    %653 = vmatprep.mubr.f32.mxu0 0.0
    %654 = vmatmul.mubr.f32.gmra.mxu0 %v584
    %v655 = vpop.f32.mrf.mxu0
    %v656 = vadd.f32 %v581, %v655
    %v657 = vpop.f32.mrf.mxu0
    %658 = vmatprep.mubr.f32.mxu0 0.0
    %659 = vmatmul.mubr.f32.gmra.mxu0 %v587
    %v660 = vpop.f32.mrf.mxu0
    %v661 = vadd.f32 %v581, %v660
    %v662 = vpop.f32.mrf.mxu0
    %663 = vdwg.mxu0
    %v664 = vadd.f32 %v63, %v656
    %v665 = vadd.f32 %v64, %v661
    %v666 = vld [vmem:[%s6] sm:$0x1]
    %v667 = vld [vmem:[%s7] sm:$0x1]
    %v668 = vsel %vm75, %v664, 0.0
    %669 = vadd.xlane.f32.xlu0 %v668
    %v670 = vpop.xlane.xlu0 %669
    %v671 = vsel %vm75, %v665, 0.0
    %672 = vadd.xlane.f32.xlu0 %v671
    %v673 = vpop.xlane.xlu0 %672
    %v674 = vrcp.pop 8.0
    %v675 = vmul.f32 %v670, %v674
    %v676 = vmul.f32 %v673, %v674
    %v677 = vsub.f32 %v664, %v675
    %v678 = vsub.f32 %v665, %v676
    %v679 = vmul.f32 %v677, %v677
    %v680 = vmul.f32 %v678, %v678
    %v681 = vsel %vm75, %v679, 0.0
    %682 = vadd.xlane.f32.xlu0 %v681
    %v683 = vpop.xlane.xlu0 %682
    %v684 = vsel %vm75, %v680, 0.0
    %685 = vadd.xlane.f32.xlu0 %v684
    %v686 = vpop.xlane.xlu0 %685
    %v687 = vmul.f32 %v683, %v674
    %v688 = vmul.f32 %v686, %v674
    %v689 = vadd.f32 %v687, 1e-05
    %v690 = vadd.f32 %v688, 1e-05
    %v691 = vrsqrt.pop %v689
    %v692 = vrsqrt.pop %v690
    %v693 = vmul.f32 %v677, %v691
    %v694 = vmul.f32 %v678, %v692
    %v696 = vlaneseq
    %v697 = vshrl.u32 %v696, 7
    %v698 = vsub.s32 0, %v697
    %v699 = vrot.slane %v666, %v698
    %v701 = vmul.f32 %v693, %v699
    %v702 = vmul.f32 %v694, %v699
    %v704 = vlaneseq
    %v705 = vshrl.u32 %v704, 7
    %v706 = vsub.s32 0, %v705
    %v707 = vrot.slane %v667, %v706
    %v709 = vadd.f32 %v701, %v707
    %v710 = vadd.f32 %v702, %v707
    %v711 = vld [vmem:[%s8] sm:$0xff]
    %v712 = vld [vmem:[%s9] sm:$0x1]
    %v714 = vlaneseq
    %v715 = vshrl.u32 %v714, 7
    %v716 = vsub.s32 0, %v715
    %v717 = vrot.slane %v712, %v716
    %v720 = vsel %vm75, %v709, 0
    %v723 = vsel %vm75, %v710, 0
    %725 = vmatprep.subr.mxu0 0.0
    %726 = vmatpush1.msra.mxu0 0.0
    %727 = vmatprep.subr.mxu0 0.0
    %728 = vmatpush1.msra.mxu0 0.0
    %729 = vmatprep.subr.mxu0 0.0
    %730 = vmatpush1.msra.mxu0 0.0
    %731 = vmatprep.subr.mxu0 0.0
    %732 = vmatpush1.msra.mxu0 0.0
    %733 = vmatprep.subr.mxu0 0.0
    %734 = vmatpush1.msra.mxu0 0.0
    %735 = vmatprep.subr.mxu0 0.0
    %736 = vmatpush1.msra.mxu0 0.0
    %737 = vmatprep.subr.mxu0 0.0
    %738 = vmatpush1.msra.mxu0 0.0
    %739 = vmatprep.subr.mxu0 0.0
    %740 = vmatpush1.msra.mxu0 0.0
    %741 = vmatprep.subr.mxu0 0.0
    %742 = vmatpush1.msra.mxu0 0.0
    %743 = vmatprep.subr.mxu0 0.0
    %744 = vmatpush1.msra.mxu0 0.0
    %745 = vmatprep.subr.mxu0 0.0
    %746 = vmatpush1.msra.mxu0 0.0
    %747 = vmatprep.subr.mxu0 0.0
    %748 = vmatpush1.msra.mxu0 0.0
    %749 = vmatprep.subr.mxu0 0.0
    %750 = vmatpush1.msra.mxu0 0.0
    %751 = vmatprep.subr.mxu0 0.0
    %752 = vmatpush1.msra.mxu0 0.0
    %753 = vmatprep.subr.mxu0 0.0
    %754 = vmatpush1.msra.mxu0 0.0
    %755 = vmatprep.subr.mxu0 0.0
    %756 = vmatpush1.msra.mxu0 %v711
    %757 = vmatprep.subr.mxu0 0.0
    %758 = vmatpush2.msra.mxu0 0.0
    %759 = vmatprep.subr.mxu0 0.0
    %760 = vmatpush2.msra.mxu0 0.0
    %761 = vmatprep.subr.mxu0 0.0
    %762 = vmatpush2.msra.mxu0 0.0
    %763 = vmatprep.subr.mxu0 0.0
    %764 = vmatpush2.msra.mxu0 0.0
    %765 = vmatprep.subr.mxu0 0.0
    %766 = vmatpush2.msra.mxu0 0.0
    %767 = vmatprep.subr.mxu0 0.0
    %768 = vmatpush2.msra.mxu0 0.0
    %769 = vmatprep.subr.mxu0 0.0
    %770 = vmatpush2.msra.mxu0 0.0
    %771 = vmatprep.subr.mxu0 0.0
    %772 = vmatpush2.msra.mxu0 0.0
    %773 = vmatprep.subr.mxu0 0.0
    %774 = vmatpush2.msra.mxu0 0.0
    %775 = vmatprep.subr.mxu0 0.0
    %776 = vmatpush2.msra.mxu0 0.0
    %777 = vmatprep.subr.mxu0 0.0
    %778 = vmatpush2.msra.mxu0 0.0
    %779 = vmatprep.subr.mxu0 0.0
    %780 = vmatpush2.msra.mxu0 0.0
    %781 = vmatprep.subr.mxu0 0.0
    %782 = vmatpush2.msra.mxu0 0.0
    %783 = vmatprep.subr.mxu0 0.0
    %784 = vmatpush2.msra.mxu0 0.0
    %785 = vmatprep.subr.mxu0 0.0
    %786 = vmatpush2.msra.mxu0 0.0
    %787 = vmatprep.subr.mxu0 0.0
    %788 = vmatpush2.msra.mxu0 0.0
    %789 = vmatprep.mubr.f32.mxu0 0.0
    %790 = vmatmul.mubr.f32.gmra.mxu0 %v720
    %v791 = vpop.f32.mrf.mxu0
    %v792 = vadd.f32 %v717, %v791
    %v793 = vpop.f32.mrf.mxu0
    %794 = vmatprep.mubr.f32.mxu0 0.0
    %795 = vmatmul.mubr.f32.gmra.mxu0 %v723
    %v796 = vpop.f32.mrf.mxu0
    %v797 = vadd.f32 %v717, %v796
    %v798 = vpop.f32.mrf.mxu0
    %799 = vdwg.mxu0
    %v800 = vmax.f32 %v792, 0.0
    %v801 = vmax.f32 %v797, 0.0
    %v802 = vld [vmem:[%s10] sm:$0xff]
    %v803 = vld [vmem:[%s10 + $0x8] sm:$0xff]
    %v804 = vld [vmem:[%s10 + $0x10] sm:$0xff]
    %v805 = vld [vmem:[%s10 + $0x18] sm:$0xff]
    %v806 = vld [vmem:[%s11] sm:$0x1]
    %v808 = vlaneseq
    %v809 = vshrl.u32 %v808, 7
    %v810 = vsub.s32 0, %v809
    %v811 = vrot.slane %v806, %v810
    %vm813 = vcmask 261120
    %v815 = vsel %vm813, %v800, 0
    %v818 = vsel %vm813, %v801, 0
    %820 = vmatprep.subr.mxu0 0.0
    %821 = vmatpush1.msra.mxu0 0.0
    %822 = vmatprep.subr.mxu0 0.0
    %823 = vmatpush1.msra.mxu0 0.0
    %824 = vmatprep.subr.mxu0 0.0
    %825 = vmatpush1.msra.mxu0 0.0
    %826 = vmatprep.subr.mxu0 0.0
    %827 = vmatpush1.msra.mxu0 0.0
    %828 = vmatprep.subr.mxu0 0.0
    %829 = vmatpush1.msra.mxu0 0.0
    %830 = vmatprep.subr.mxu0 0.0
    %831 = vmatpush1.msra.mxu0 0.0
    %832 = vmatprep.subr.mxu0 0.0
    %833 = vmatpush1.msra.mxu0 0.0
    %834 = vmatprep.subr.mxu0 0.0
    %835 = vmatpush1.msra.mxu0 0.0
    %836 = vmatprep.subr.mxu0 0.0
    %837 = vmatpush1.msra.mxu0 0.0
    %838 = vmatprep.subr.mxu0 0.0
    %839 = vmatpush1.msra.mxu0 0.0
    %840 = vmatprep.subr.mxu0 0.0
    %841 = vmatpush1.msra.mxu0 0.0
    %842 = vmatprep.subr.mxu0 0.0
    %843 = vmatpush1.msra.mxu0 0.0
    %844 = vmatprep.subr.mxu0 0.0
    %845 = vmatpush1.msra.mxu0 %v805
    %846 = vmatprep.subr.mxu0 0.0
    %847 = vmatpush1.msra.mxu0 %v804
    %848 = vmatprep.subr.mxu0 0.0
    %849 = vmatpush1.msra.mxu0 %v803
    %850 = vmatprep.subr.mxu0 0.0
    %851 = vmatpush1.msra.mxu0 %v802
    %852 = vmatprep.subr.mxu0 0.0
    %853 = vmatpush2.msra.mxu0 0.0
    %854 = vmatprep.subr.mxu0 0.0
    %855 = vmatpush2.msra.mxu0 0.0
    %856 = vmatprep.subr.mxu0 0.0
    %857 = vmatpush2.msra.mxu0 0.0
    %858 = vmatprep.subr.mxu0 0.0
    %859 = vmatpush2.msra.mxu0 0.0
    %860 = vmatprep.subr.mxu0 0.0
    %861 = vmatpush2.msra.mxu0 0.0
    %862 = vmatprep.subr.mxu0 0.0
    %863 = vmatpush2.msra.mxu0 0.0
    %864 = vmatprep.subr.mxu0 0.0
    %865 = vmatpush2.msra.mxu0 0.0
    %866 = vmatprep.subr.mxu0 0.0
    %867 = vmatpush2.msra.mxu0 0.0
    %868 = vmatprep.subr.mxu0 0.0
    %869 = vmatpush2.msra.mxu0 0.0
    %870 = vmatprep.subr.mxu0 0.0
    %871 = vmatpush2.msra.mxu0 0.0
    %872 = vmatprep.subr.mxu0 0.0
    %873 = vmatpush2.msra.mxu0 0.0
    %874 = vmatprep.subr.mxu0 0.0
    %875 = vmatpush2.msra.mxu0 0.0
    %876 = vmatprep.subr.mxu0 0.0
    %877 = vmatpush2.msra.mxu0 0.0
    %878 = vmatprep.subr.mxu0 0.0
    %879 = vmatpush2.msra.mxu0 0.0
    %880 = vmatprep.subr.mxu0 0.0
    %881 = vmatpush2.msra.mxu0 0.0
    %882 = vmatprep.subr.mxu0 0.0
    %883 = vmatpush2.msra.mxu0 0.0
    %884 = vmatprep.mubr.f32.mxu0 0.0
    %885 = vmatmul.mubr.f32.gmra.mxu0 %v815
    %v886 = vpop.f32.mrf.mxu0
    %v887 = vadd.f32 %v811, %v886
    %v888 = vpop.f32.mrf.mxu0
    %889 = vmatprep.mubr.f32.mxu0 0.0
    %890 = vmatmul.mubr.f32.gmra.mxu0 %v818
    %v891 = vpop.f32.mrf.mxu0
    %v892 = vadd.f32 %v811, %v891
    %v893 = vpop.f32.mrf.mxu0
    %894 = vdwg.mxu0
    %v895 = vadd.f32 %v709, %v887
    %v896 = vadd.f32 %v710, %v892
    %v897 = vld [vmem:[%s12] sm:$0x1]
    %v898 = vld [vmem:[%s13] sm:$0x1]
    %v899 = vsel %vm75, %v895, 0.0
    %900 = vadd.xlane.f32.xlu0 %v899
    %v901 = vpop.xlane.xlu0 %900
    %v902 = vsel %vm75, %v896, 0.0
    %903 = vadd.xlane.f32.xlu0 %v902
    %v904 = vpop.xlane.xlu0 %903
    %v905 = vmul.f32 %v901, %v674
    %v906 = vmul.f32 %v904, %v674
    %v907 = vsub.f32 %v895, %v905
    %v908 = vsub.f32 %v896, %v906
    %v909 = vmul.f32 %v907, %v907
    %v910 = vmul.f32 %v908, %v908
    %v911 = vsel %vm75, %v909, 0.0
    %912 = vadd.xlane.f32.xlu0 %v911
    %v913 = vpop.xlane.xlu0 %912
    %v914 = vsel %vm75, %v910, 0.0
    %915 = vadd.xlane.f32.xlu0 %v914
    %v916 = vpop.xlane.xlu0 %915
    %v917 = vmul.f32 %v913, %v674
    %v918 = vmul.f32 %v916, %v674
    %v919 = vadd.f32 %v917, 1e-05
    %v920 = vadd.f32 %v918, 1e-05
    %v921 = vrsqrt.pop %v919
    %v922 = vrsqrt.pop %v920
    %v923 = vmul.f32 %v907, %v921
    %v924 = vmul.f32 %v908, %v922
    %v926 = vlaneseq
    %v927 = vshrl.u32 %v926, 7
    %v928 = vsub.s32 0, %v927
    %v929 = vrot.slane %v897, %v928
    %v931 = vmul.f32 %v923, %v929
    %v932 = vmul.f32 %v924, %v929
    %v934 = vlaneseq
    %v935 = vshrl.u32 %v934, 7
    %v936 = vsub.s32 0, %v935
    %v937 = vrot.slane %v898, %v936
    %v939 = vadd.f32 %v931, %v937
    %v940 = vadd.f32 %v932, %v937
    %s941 = scalar_lea.vmem %s2, 8
    %v942 = vld [vmem:[%s941] sm:$0xff]
    %s943 = scalar_lea.vmem %s3, 1
    %v944 = vld [vmem:[%s943] sm:$0x1]
    %v946 = vlaneseq
    %v947 = vshrl.u32 %v946, 7
    %v948 = vsub.s32 0, %v947
    %v949 = vrot.slane %v944, %v948
    %v952 = vsel %vm75, %v939, 0
    %v955 = vsel %vm75, %v940, 0
    %957 = vmatprep.subr.mxu0 0.0
    %958 = vmatpush1.msra.mxu0 0.0
    %959 = vmatprep.subr.mxu0 0.0
    %960 = vmatpush1.msra.mxu0 0.0
    %961 = vmatprep.subr.mxu0 0.0
    %962 = vmatpush1.msra.mxu0 0.0
    %963 = vmatprep.subr.mxu0 0.0
    %964 = vmatpush1.msra.mxu0 0.0
    %965 = vmatprep.subr.mxu0 0.0
    %966 = vmatpush1.msra.mxu0 0.0
    %967 = vmatprep.subr.mxu0 0.0
    %968 = vmatpush1.msra.mxu0 0.0
    %969 = vmatprep.subr.mxu0 0.0
    %970 = vmatpush1.msra.mxu0 0.0
    %971 = vmatprep.subr.mxu0 0.0
    %972 = vmatpush1.msra.mxu0 0.0
    %973 = vmatprep.subr.mxu0 0.0
    %974 = vmatpush1.msra.mxu0 0.0
    %975 = vmatprep.subr.mxu0 0.0
    %976 = vmatpush1.msra.mxu0 0.0
    %977 = vmatprep.subr.mxu0 0.0
    %978 = vmatpush1.msra.mxu0 0.0
    %979 = vmatprep.subr.mxu0 0.0
    %980 = vmatpush1.msra.mxu0 0.0
    %981 = vmatprep.subr.mxu0 0.0
    %982 = vmatpush1.msra.mxu0 0.0
    %983 = vmatprep.subr.mxu0 0.0
    %984 = vmatpush1.msra.mxu0 0.0
    %985 = vmatprep.subr.mxu0 0.0
    %986 = vmatpush1.msra.mxu0 0.0
    %987 = vmatprep.subr.mxu0 0.0
    %988 = vmatpush1.msra.mxu0 %v942
    %989 = vmatprep.subr.mxu0 0.0
    %990 = vmatpush2.msra.mxu0 0.0
    %991 = vmatprep.subr.mxu0 0.0
    %992 = vmatpush2.msra.mxu0 0.0
    %993 = vmatprep.subr.mxu0 0.0
    %994 = vmatpush2.msra.mxu0 0.0
    %995 = vmatprep.subr.mxu0 0.0
    %996 = vmatpush2.msra.mxu0 0.0
    %997 = vmatprep.subr.mxu0 0.0
    %998 = vmatpush2.msra.mxu0 0.0
    %999 = vmatprep.subr.mxu0 0.0
    %1000 = vmatpush2.msra.mxu0 0.0
    %1001 = vmatprep.subr.mxu0 0.0
    %1002 = vmatpush2.msra.mxu0 0.0
    %1003 = vmatprep.subr.mxu0 0.0
    %1004 = vmatpush2.msra.mxu0 0.0
    %1005 = vmatprep.subr.mxu0 0.0
    %1006 = vmatpush2.msra.mxu0 0.0
    %1007 = vmatprep.subr.mxu0 0.0
    %1008 = vmatpush2.msra.mxu0 0.0
    %1009 = vmatprep.subr.mxu0 0.0
    %1010 = vmatpush2.msra.mxu0 0.0
    %1011 = vmatprep.subr.mxu0 0.0
    %1012 = vmatpush2.msra.mxu0 0.0
    %1013 = vmatprep.subr.mxu0 0.0
    %1014 = vmatpush2.msra.mxu0 0.0
    %1015 = vmatprep.subr.mxu0 0.0
    %1016 = vmatpush2.msra.mxu0 0.0
    %1017 = vmatprep.subr.mxu0 0.0
    %1018 = vmatpush2.msra.mxu0 0.0
    %1019 = vmatprep.subr.mxu0 0.0
    %1020 = vmatpush2.msra.mxu0 0.0
    %1021 = vmatprep.mubr.f32.mxu0 0.0
    %1022 = vmatmul.mubr.f32.gmra.mxu0 %v952
    %v1023 = vpop.f32.mrf.mxu0
    %v1024 = vadd.f32 %v949, %v1023
    %v1025 = vpop.f32.mrf.mxu0
    %1026 = vmatprep.mubr.f32.mxu0 0.0
    %1027 = vmatmul.mubr.f32.gmra.mxu0 %v955
    %v1028 = vpop.f32.mrf.mxu0
    %v1029 = vadd.f32 %v949, %v1028
    %v1030 = vpop.f32.mrf.mxu0
    %1031 = vdwg.mxu0
    %1034 = vrot.lane.b32.xlu0 %v1024, 120
    %v1035 = vpop.permute.xlu0 %1034
    %1036 = vrot.lane.b32.xlu0 %v1029, 120
    %v1037 = vpop.permute.xlu0 %1036
    %v1038 = vsel %vm163, %v1024, 0
    %v1040 = vsel %vm163, %v1029, 0
    %v1042 = vsel %vm163, %v1035, 0
    %v1044 = vsel %vm163, %v1037, 0
    %1046 = vmatprep.subr.mxu0 0.0
    %1047 = vmatpush1.xpose.msra.mxu0 0.0
    %1048 = vmatprep.subr.mxu0 0.0
    %1049 = vmatpush1.xpose.msra.mxu0 0.0
    %1050 = vmatprep.subr.mxu0 0.0
    %1051 = vmatpush1.xpose.msra.mxu0 0.0
    %1052 = vmatprep.subr.mxu0 0.0
    %1053 = vmatpush1.xpose.msra.mxu0 0.0
    %1054 = vmatprep.subr.mxu0 0.0
    %1055 = vmatpush1.xpose.msra.mxu0 0.0
    %1056 = vmatprep.subr.mxu0 0.0
    %1057 = vmatpush1.xpose.msra.mxu0 0.0
    %1058 = vmatprep.subr.mxu0 0.0
    %1059 = vmatpush1.xpose.msra.mxu0 0.0
    %1060 = vmatprep.subr.mxu0 0.0
    %1061 = vmatpush1.xpose.msra.mxu0 0.0
    %1062 = vmatprep.subr.mxu0 0.0
    %1063 = vmatpush1.xpose.msra.mxu0 0.0
    %1064 = vmatprep.subr.mxu0 0.0
    %1065 = vmatpush1.xpose.msra.mxu0 0.0
    %1066 = vmatprep.subr.mxu0 0.0
    %1067 = vmatpush1.xpose.msra.mxu0 0.0
    %1068 = vmatprep.subr.mxu0 0.0
    %1069 = vmatpush1.xpose.msra.mxu0 0.0
    %1070 = vmatprep.subr.mxu0 0.0
    %1071 = vmatpush1.xpose.msra.mxu0 0.0
    %1072 = vmatprep.subr.mxu0 0.0
    %1073 = vmatpush1.xpose.msra.mxu0 0.0
    %1074 = vmatprep.subr.mxu0 0.0
    %1075 = vmatpush1.xpose.msra.mxu0 %v1044
    %1076 = vmatprep.subr.mxu0 0.0
    %1077 = vmatpush1.xpose.msra.mxu0 %v1042
    %1078 = vmatprep.subr.mxu0 0.0
    %1079 = vmatpush2.xpose.msra.mxu0 0.0
    %1080 = vmatprep.subr.mxu0 0.0
    %1081 = vmatpush2.xpose.msra.mxu0 0.0
    %1082 = vmatprep.subr.mxu0 0.0
    %1083 = vmatpush2.xpose.msra.mxu0 0.0
    %1084 = vmatprep.subr.mxu0 0.0
    %1085 = vmatpush2.xpose.msra.mxu0 0.0
    %1086 = vmatprep.subr.mxu0 0.0
    %1087 = vmatpush2.xpose.msra.mxu0 0.0
    %1088 = vmatprep.subr.mxu0 0.0
    %1089 = vmatpush2.xpose.msra.mxu0 0.0
    %1090 = vmatprep.subr.mxu0 0.0
    %1091 = vmatpush2.xpose.msra.mxu0 0.0
    %1092 = vmatprep.subr.mxu0 0.0
    %1093 = vmatpush2.xpose.msra.mxu0 0.0
    %1094 = vmatprep.subr.mxu0 0.0
    %1095 = vmatpush2.xpose.msra.mxu0 0.0
    %1096 = vmatprep.subr.mxu0 0.0
    %1097 = vmatpush2.xpose.msra.mxu0 0.0
    %1098 = vmatprep.subr.mxu0 0.0
    %1099 = vmatpush2.xpose.msra.mxu0 0.0
    %1100 = vmatprep.subr.mxu0 0.0
    %1101 = vmatpush2.xpose.msra.mxu0 0.0
    %1102 = vmatprep.subr.mxu0 0.0
    %1103 = vmatpush2.xpose.msra.mxu0 0.0
    %1104 = vmatprep.subr.mxu0 0.0
    %1105 = vmatpush2.xpose.msra.mxu0 0.0
    %1106 = vmatprep.subr.mxu0 0.0
    %1107 = vmatpush2.xpose.msra.mxu0 0.0
    %1108 = vmatprep.subr.mxu0 0.0
    %1109 = vmatpush2.xpose.msra.mxu0 0.0
    %1110 = vmatprep.mubr.f32.mxu0 0.0
    %1111 = vmatmul.mubr.f32.gmra.mxu0 %v1038
    %v1112 = vpop.f32.mrf.mxu0
    %v1113 = vadd.f32 0.0, %v1112
    %v1114 = vpop.f32.mrf.mxu0
    %1115 = vmatprep.mubr.f32.mxu0 0.0
    %1116 = vmatmul.mubr.f32.gmra.mxu0 %v1040
    %v1117 = vpop.f32.mrf.mxu0
    %v1118 = vadd.f32 0.0, %v1117
    %v1119 = vpop.f32.mrf.mxu0
    %1120 = vdwg.mxu0
    %v1121 = vmul.f32 %v1113, 0.5
    %v1122 = vmul.f32 %v1118, 0.5
    %v1123 = vadd.f32 %v1121, %v65
    %v1124 = vadd.f32 %v1122, %v66
    %v1125 = vsel %vm251, %v1123, -inf
    %1126 = vmax.xlane.f32.xlu0 %v1125
    %v1127 = vpop.xlane.xlu0 %1126
    %v1128 = vsel %vm251, %v1124, -inf
    %1129 = vmax.xlane.f32.xlu0 %v1128
    %v1130 = vpop.xlane.xlu0 %1129
    %v1131 = vsub.f32 %v1123, %v1127
    %v1132 = vsub.f32 %v1124, %v1130
    %v1133 = vmul.f32 %v1131, 1.442695
    %v1134 = vpow.pop %v1133
    %v1135 = vmul.f32 %v1132, 1.442695
    %v1136 = vpow.pop %v1135
    %v1137 = vsel %vm251, %v1134, 0.0
    %1138 = vadd.xlane.f32.xlu0 %v1137
    %v1139 = vpop.xlane.xlu0 %1138
    %v1140 = vsel %vm251, %v1136, 0.0
    %1141 = vadd.xlane.f32.xlu0 %v1140
    %v1142 = vpop.xlane.xlu0 %1141
    %v1143 = vrcp.pop %v1139
    %v1144 = vrcp.pop %v1142
    %v1145 = vmul.f32 %v1134, %v1143
    %v1146 = vmul.f32 %v1136, %v1144
    %1147 = vrot.lane.b32.xlu0 %v1024, 112
    %v1148 = vpop.permute.xlu0 %1147
    %1149 = vrot.lane.b32.xlu0 %v1029, 112
    %v1150 = vpop.permute.xlu0 %1149
    %v1154 = vsel %vm251, %v1145, 0
    %v1157 = vsel %vm251, %v1146, 0
    %1159 = vmatprep.subr.mxu0 0.0
    %1160 = vmatpush1.msra.mxu0 0.0
    %1161 = vmatprep.subr.mxu0 0.0
    %1162 = vmatpush1.msra.mxu0 0.0
    %1163 = vmatprep.subr.mxu0 0.0
    %1164 = vmatpush1.msra.mxu0 0.0
    %1165 = vmatprep.subr.mxu0 0.0
    %1166 = vmatpush1.msra.mxu0 0.0
    %1167 = vmatprep.subr.mxu0 0.0
    %1168 = vmatpush1.msra.mxu0 0.0
    %1169 = vmatprep.subr.mxu0 0.0
    %1170 = vmatpush1.msra.mxu0 0.0
    %1171 = vmatprep.subr.mxu0 0.0
    %1172 = vmatpush1.msra.mxu0 0.0
    %1173 = vmatprep.subr.mxu0 0.0
    %1174 = vmatpush1.msra.mxu0 0.0
    %1175 = vmatprep.subr.mxu0 0.0
    %1176 = vmatpush1.msra.mxu0 0.0
    %1177 = vmatprep.subr.mxu0 0.0
    %1178 = vmatpush1.msra.mxu0 0.0
    %1179 = vmatprep.subr.mxu0 0.0
    %1180 = vmatpush1.msra.mxu0 0.0
    %1181 = vmatprep.subr.mxu0 0.0
    %1182 = vmatpush1.msra.mxu0 0.0
    %1183 = vmatprep.subr.mxu0 0.0
    %1184 = vmatpush1.msra.mxu0 0.0
    %1185 = vmatprep.subr.mxu0 0.0
    %1186 = vmatpush1.msra.mxu0 0.0
    %1187 = vmatprep.subr.mxu0 0.0
    %1188 = vmatpush1.msra.mxu0 %v1150
    %1189 = vmatprep.subr.mxu0 0.0
    %1190 = vmatpush1.msra.mxu0 %v1148
    %1191 = vmatprep.subr.mxu0 0.0
    %1192 = vmatpush2.msra.mxu0 0.0
    %1193 = vmatprep.subr.mxu0 0.0
    %1194 = vmatpush2.msra.mxu0 0.0
    %1195 = vmatprep.subr.mxu0 0.0
    %1196 = vmatpush2.msra.mxu0 0.0
    %1197 = vmatprep.subr.mxu0 0.0
    %1198 = vmatpush2.msra.mxu0 0.0
    %1199 = vmatprep.subr.mxu0 0.0
    %1200 = vmatpush2.msra.mxu0 0.0
    %1201 = vmatprep.subr.mxu0 0.0
    %1202 = vmatpush2.msra.mxu0 0.0
    %1203 = vmatprep.subr.mxu0 0.0
    %1204 = vmatpush2.msra.mxu0 0.0
    %1205 = vmatprep.subr.mxu0 0.0
    %1206 = vmatpush2.msra.mxu0 0.0
    %1207 = vmatprep.subr.mxu0 0.0
    %1208 = vmatpush2.msra.mxu0 0.0
    %1209 = vmatprep.subr.mxu0 0.0
    %1210 = vmatpush2.msra.mxu0 0.0
    %1211 = vmatprep.subr.mxu0 0.0
    %1212 = vmatpush2.msra.mxu0 0.0
    %1213 = vmatprep.subr.mxu0 0.0
    %1214 = vmatpush2.msra.mxu0 0.0
    %1215 = vmatprep.subr.mxu0 0.0
    %1216 = vmatpush2.msra.mxu0 0.0
    %1217 = vmatprep.subr.mxu0 0.0
    %1218 = vmatpush2.msra.mxu0 0.0
    %1219 = vmatprep.subr.mxu0 0.0
    %1220 = vmatpush2.msra.mxu0 0.0
    %1221 = vmatprep.subr.mxu0 0.0
    %1222 = vmatpush2.msra.mxu0 0.0
    %1223 = vmatprep.mubr.f32.mxu0 0.0
    %1224 = vmatmul.mubr.f32.gmra.mxu0 %v1154
    %v1225 = vpop.f32.mrf.mxu0
    %v1226 = vadd.f32 0.0, %v1225
    %v1227 = vpop.f32.mrf.mxu0
    %1228 = vmatprep.mubr.f32.mxu0 0.0
    %1229 = vmatmul.mubr.f32.gmra.mxu0 %v1157
    %v1230 = vpop.f32.mrf.mxu0
    %v1231 = vadd.f32 0.0, %v1230
    %v1232 = vpop.f32.mrf.mxu0
    %1233 = vdwg.mxu0
    %1234 = vrot.lane.b32.xlu0 %v1024, 124
    %v1235 = vpop.permute.xlu0 %1234
    %1236 = vrot.lane.b32.xlu0 %v1029, 124
    %v1237 = vpop.permute.xlu0 %1236
    %1238 = vrot.lane.b32.xlu0 %v1024, 116
    %v1239 = vpop.permute.xlu0 %1238
    %1240 = vrot.lane.b32.xlu0 %v1029, 116
    %v1241 = vpop.permute.xlu0 %1240
    %v1242 = vsel %vm163, %v1235, 0
    %v1244 = vsel %vm163, %v1237, 0
    %v1246 = vsel %vm163, %v1239, 0
    %v1248 = vsel %vm163, %v1241, 0
    %1250 = vmatprep.subr.mxu0 0.0
    %1251 = vmatpush1.xpose.msra.mxu0 0.0
    %1252 = vmatprep.subr.mxu0 0.0
    %1253 = vmatpush1.xpose.msra.mxu0 0.0
    %1254 = vmatprep.subr.mxu0 0.0
    %1255 = vmatpush1.xpose.msra.mxu0 0.0
    %1256 = vmatprep.subr.mxu0 0.0
    %1257 = vmatpush1.xpose.msra.mxu0 0.0
    %1258 = vmatprep.subr.mxu0 0.0
    %1259 = vmatpush1.xpose.msra.mxu0 0.0
    %1260 = vmatprep.subr.mxu0 0.0
    %1261 = vmatpush1.xpose.msra.mxu0 0.0
    %1262 = vmatprep.subr.mxu0 0.0
    %1263 = vmatpush1.xpose.msra.mxu0 0.0
    %1264 = vmatprep.subr.mxu0 0.0
    %1265 = vmatpush1.xpose.msra.mxu0 0.0
    %1266 = vmatprep.subr.mxu0 0.0
    %1267 = vmatpush1.xpose.msra.mxu0 0.0
    %1268 = vmatprep.subr.mxu0 0.0
    %1269 = vmatpush1.xpose.msra.mxu0 0.0
    %1270 = vmatprep.subr.mxu0 0.0
    %1271 = vmatpush1.xpose.msra.mxu0 0.0
    %1272 = vmatprep.subr.mxu0 0.0
    %1273 = vmatpush1.xpose.msra.mxu0 0.0
    %1274 = vmatprep.subr.mxu0 0.0
    %1275 = vmatpush1.xpose.msra.mxu0 0.0
    %1276 = vmatprep.subr.mxu0 0.0
    %1277 = vmatpush1.xpose.msra.mxu0 0.0
    %1278 = vmatprep.subr.mxu0 0.0
    %1279 = vmatpush1.xpose.msra.mxu0 %v1248
    %1280 = vmatprep.subr.mxu0 0.0
    %1281 = vmatpush1.xpose.msra.mxu0 %v1246
    %1282 = vmatprep.subr.mxu0 0.0
    %1283 = vmatpush2.xpose.msra.mxu0 0.0
    %1284 = vmatprep.subr.mxu0 0.0
    %1285 = vmatpush2.xpose.msra.mxu0 0.0
    %1286 = vmatprep.subr.mxu0 0.0
    %1287 = vmatpush2.xpose.msra.mxu0 0.0
    %1288 = vmatprep.subr.mxu0 0.0
    %1289 = vmatpush2.xpose.msra.mxu0 0.0
    %1290 = vmatprep.subr.mxu0 0.0
    %1291 = vmatpush2.xpose.msra.mxu0 0.0
    %1292 = vmatprep.subr.mxu0 0.0
    %1293 = vmatpush2.xpose.msra.mxu0 0.0
    %1294 = vmatprep.subr.mxu0 0.0
    %1295 = vmatpush2.xpose.msra.mxu0 0.0
    %1296 = vmatprep.subr.mxu0 0.0
    %1297 = vmatpush2.xpose.msra.mxu0 0.0
    %1298 = vmatprep.subr.mxu0 0.0
    %1299 = vmatpush2.xpose.msra.mxu0 0.0
    %1300 = vmatprep.subr.mxu0 0.0
    %1301 = vmatpush2.xpose.msra.mxu0 0.0
    %1302 = vmatprep.subr.mxu0 0.0
    %1303 = vmatpush2.xpose.msra.mxu0 0.0
    %1304 = vmatprep.subr.mxu0 0.0
    %1305 = vmatpush2.xpose.msra.mxu0 0.0
    %1306 = vmatprep.subr.mxu0 0.0
    %1307 = vmatpush2.xpose.msra.mxu0 0.0
    %1308 = vmatprep.subr.mxu0 0.0
    %1309 = vmatpush2.xpose.msra.mxu0 0.0
    %1310 = vmatprep.subr.mxu0 0.0
    %1311 = vmatpush2.xpose.msra.mxu0 0.0
    %1312 = vmatprep.subr.mxu0 0.0
    %1313 = vmatpush2.xpose.msra.mxu0 0.0
    %1314 = vmatprep.mubr.f32.mxu0 0.0
    %1315 = vmatmul.mubr.f32.gmra.mxu0 %v1242
    %v1316 = vpop.f32.mrf.mxu0
    %v1317 = vadd.f32 0.0, %v1316
    %v1318 = vpop.f32.mrf.mxu0
    %1319 = vmatprep.mubr.f32.mxu0 0.0
    %1320 = vmatmul.mubr.f32.gmra.mxu0 %v1244
    %v1321 = vpop.f32.mrf.mxu0
    %v1322 = vadd.f32 0.0, %v1321
    %v1323 = vpop.f32.mrf.mxu0
    %1324 = vdwg.mxu0
    %v1325 = vmul.f32 %v1317, 0.5
    %v1326 = vmul.f32 %v1322, 0.5
    %v1327 = vadd.f32 %v1325, %v65
    %v1328 = vadd.f32 %v1326, %v66
    %v1329 = vsel %vm251, %v1327, -inf
    %1330 = vmax.xlane.f32.xlu0 %v1329
    %v1331 = vpop.xlane.xlu0 %1330
    %v1332 = vsel %vm251, %v1328, -inf
    %1333 = vmax.xlane.f32.xlu0 %v1332
    %v1334 = vpop.xlane.xlu0 %1333
    %v1335 = vsub.f32 %v1327, %v1331
    %v1336 = vsub.f32 %v1328, %v1334
    %v1337 = vmul.f32 %v1335, 1.442695
    %v1338 = vpow.pop %v1337
    %v1339 = vmul.f32 %v1336, 1.442695
    %v1340 = vpow.pop %v1339
    %v1341 = vsel %vm251, %v1338, 0.0
    %1342 = vadd.xlane.f32.xlu0 %v1341
    %v1343 = vpop.xlane.xlu0 %1342
    %v1344 = vsel %vm251, %v1340, 0.0
    %1345 = vadd.xlane.f32.xlu0 %v1344
    %v1346 = vpop.xlane.xlu0 %1345
    %v1347 = vrcp.pop %v1343
    %v1348 = vrcp.pop %v1346
    %v1349 = vmul.f32 %v1338, %v1347
    %v1350 = vmul.f32 %v1340, %v1348
    %1351 = vrot.lane.b32.xlu0 %v1024, 108
    %v1352 = vpop.permute.xlu0 %1351
    %1353 = vrot.lane.b32.xlu0 %v1029, 108
    %v1354 = vpop.permute.xlu0 %1353
    %v1358 = vsel %vm251, %v1349, 0
    %v1361 = vsel %vm251, %v1350, 0
    %1363 = vmatprep.subr.mxu0 0.0
    %1364 = vmatpush1.msra.mxu0 0.0
    %1365 = vmatprep.subr.mxu0 0.0
    %1366 = vmatpush1.msra.mxu0 0.0
    %1367 = vmatprep.subr.mxu0 0.0
    %1368 = vmatpush1.msra.mxu0 0.0
    %1369 = vmatprep.subr.mxu0 0.0
    %1370 = vmatpush1.msra.mxu0 0.0
    %1371 = vmatprep.subr.mxu0 0.0
    %1372 = vmatpush1.msra.mxu0 0.0
    %1373 = vmatprep.subr.mxu0 0.0
    %1374 = vmatpush1.msra.mxu0 0.0
    %1375 = vmatprep.subr.mxu0 0.0
    %1376 = vmatpush1.msra.mxu0 0.0
    %1377 = vmatprep.subr.mxu0 0.0
    %1378 = vmatpush1.msra.mxu0 0.0
    %1379 = vmatprep.subr.mxu0 0.0
    %1380 = vmatpush1.msra.mxu0 0.0
    %1381 = vmatprep.subr.mxu0 0.0
    %1382 = vmatpush1.msra.mxu0 0.0
    %1383 = vmatprep.subr.mxu0 0.0
    %1384 = vmatpush1.msra.mxu0 0.0
    %1385 = vmatprep.subr.mxu0 0.0
    %1386 = vmatpush1.msra.mxu0 0.0
    %1387 = vmatprep.subr.mxu0 0.0
    %1388 = vmatpush1.msra.mxu0 0.0
    %1389 = vmatprep.subr.mxu0 0.0
    %1390 = vmatpush1.msra.mxu0 0.0
    %1391 = vmatprep.subr.mxu0 0.0
    %1392 = vmatpush1.msra.mxu0 %v1354
    %1393 = vmatprep.subr.mxu0 0.0
    %1394 = vmatpush1.msra.mxu0 %v1352
    %1395 = vmatprep.subr.mxu0 0.0
    %1396 = vmatpush2.msra.mxu0 0.0
    %1397 = vmatprep.subr.mxu0 0.0
    %1398 = vmatpush2.msra.mxu0 0.0
    %1399 = vmatprep.subr.mxu0 0.0
    %1400 = vmatpush2.msra.mxu0 0.0
    %1401 = vmatprep.subr.mxu0 0.0
    %1402 = vmatpush2.msra.mxu0 0.0
    %1403 = vmatprep.subr.mxu0 0.0
    %1404 = vmatpush2.msra.mxu0 0.0
    %1405 = vmatprep.subr.mxu0 0.0
    %1406 = vmatpush2.msra.mxu0 0.0
    %1407 = vmatprep.subr.mxu0 0.0
    %1408 = vmatpush2.msra.mxu0 0.0
    %1409 = vmatprep.subr.mxu0 0.0
    %1410 = vmatpush2.msra.mxu0 0.0
    %1411 = vmatprep.subr.mxu0 0.0
    %1412 = vmatpush2.msra.mxu0 0.0
    %1413 = vmatprep.subr.mxu0 0.0
    %1414 = vmatpush2.msra.mxu0 0.0
    %1415 = vmatprep.subr.mxu0 0.0
    %1416 = vmatpush2.msra.mxu0 0.0
    %1417 = vmatprep.subr.mxu0 0.0
    %1418 = vmatpush2.msra.mxu0 0.0
    %1419 = vmatprep.subr.mxu0 0.0
    %1420 = vmatpush2.msra.mxu0 0.0
    %1421 = vmatprep.subr.mxu0 0.0
    %1422 = vmatpush2.msra.mxu0 0.0
    %1423 = vmatprep.subr.mxu0 0.0
    %1424 = vmatpush2.msra.mxu0 0.0
    %1425 = vmatprep.subr.mxu0 0.0
    %1426 = vmatpush2.msra.mxu0 0.0
    %1427 = vmatprep.mubr.f32.mxu0 0.0
    %1428 = vmatmul.mubr.f32.gmra.mxu0 %v1358
    %v1429 = vpop.f32.mrf.mxu0
    %v1430 = vadd.f32 0.0, %v1429
    %v1431 = vpop.f32.mrf.mxu0
    %1432 = vmatprep.mubr.f32.mxu0 0.0
    %1433 = vmatmul.mubr.f32.gmra.mxu0 %v1361
    %v1434 = vpop.f32.mrf.mxu0
    %v1435 = vadd.f32 0.0, %v1434
    %v1436 = vpop.f32.mrf.mxu0
    %1437 = vdwg.mxu0
    %1440 = vrot.lane.b32.xlu0 %v1430, 4
    %v1441 = vpop.permute.xlu0 %1440
    %1442 = vrot.lane.b32.xlu0 %v1435, 4
    %v1443 = vpop.permute.xlu0 %1442
    %v1446 = vsel %vm163, %v1226, %v1441
    %v1447 = vsel %vm163, %v1231, %v1443
    %s1448 = scalar_lea.vmem %s4, 8
    %v1449 = vld [vmem:[%s1448] sm:$0xff]
    %s1450 = scalar_lea.vmem %s5, 1
    %v1451 = vld [vmem:[%s1450] sm:$0x1]
    %v1453 = vlaneseq
    %v1454 = vshrl.u32 %v1453, 7
    %v1455 = vsub.s32 0, %v1454
    %v1456 = vrot.slane %v1451, %v1455
    %v1459 = vsel %vm75, %v1446, 0
    %v1462 = vsel %vm75, %v1447, 0
    %1464 = vmatprep.subr.mxu0 0.0
    %1465 = vmatpush1.msra.mxu0 0.0
    %1466 = vmatprep.subr.mxu0 0.0
    %1467 = vmatpush1.msra.mxu0 0.0
    %1468 = vmatprep.subr.mxu0 0.0
    %1469 = vmatpush1.msra.mxu0 0.0
    %1470 = vmatprep.subr.mxu0 0.0
    %1471 = vmatpush1.msra.mxu0 0.0
    %1472 = vmatprep.subr.mxu0 0.0
    %1473 = vmatpush1.msra.mxu0 0.0
    %1474 = vmatprep.subr.mxu0 0.0
    %1475 = vmatpush1.msra.mxu0 0.0
    %1476 = vmatprep.subr.mxu0 0.0
    %1477 = vmatpush1.msra.mxu0 0.0
    %1478 = vmatprep.subr.mxu0 0.0
    %1479 = vmatpush1.msra.mxu0 0.0
    %1480 = vmatprep.subr.mxu0 0.0
    %1481 = vmatpush1.msra.mxu0 0.0
    %1482 = vmatprep.subr.mxu0 0.0
    %1483 = vmatpush1.msra.mxu0 0.0
    %1484 = vmatprep.subr.mxu0 0.0
    %1485 = vmatpush1.msra.mxu0 0.0
    %1486 = vmatprep.subr.mxu0 0.0
    %1487 = vmatpush1.msra.mxu0 0.0
    %1488 = vmatprep.subr.mxu0 0.0
    %1489 = vmatpush1.msra.mxu0 0.0
    %1490 = vmatprep.subr.mxu0 0.0
    %1491 = vmatpush1.msra.mxu0 0.0
    %1492 = vmatprep.subr.mxu0 0.0
    %1493 = vmatpush1.msra.mxu0 0.0
    %1494 = vmatprep.subr.mxu0 0.0
    %1495 = vmatpush1.msra.mxu0 %v1449
    %1496 = vmatprep.subr.mxu0 0.0
    %1497 = vmatpush2.msra.mxu0 0.0
    %1498 = vmatprep.subr.mxu0 0.0
    %1499 = vmatpush2.msra.mxu0 0.0
    %1500 = vmatprep.subr.mxu0 0.0
    %1501 = vmatpush2.msra.mxu0 0.0
    %1502 = vmatprep.subr.mxu0 0.0
    %1503 = vmatpush2.msra.mxu0 0.0
    %1504 = vmatprep.subr.mxu0 0.0
    %1505 = vmatpush2.msra.mxu0 0.0
    %1506 = vmatprep.subr.mxu0 0.0
    %1507 = vmatpush2.msra.mxu0 0.0
    %1508 = vmatprep.subr.mxu0 0.0
    %1509 = vmatpush2.msra.mxu0 0.0
    %1510 = vmatprep.subr.mxu0 0.0
    %1511 = vmatpush2.msra.mxu0 0.0
    %1512 = vmatprep.subr.mxu0 0.0
    %1513 = vmatpush2.msra.mxu0 0.0
    %1514 = vmatprep.subr.mxu0 0.0
    %1515 = vmatpush2.msra.mxu0 0.0
    %1516 = vmatprep.subr.mxu0 0.0
    %1517 = vmatpush2.msra.mxu0 0.0
    %1518 = vmatprep.subr.mxu0 0.0
    %1519 = vmatpush2.msra.mxu0 0.0
    %1520 = vmatprep.subr.mxu0 0.0
    %1521 = vmatpush2.msra.mxu0 0.0
    %1522 = vmatprep.subr.mxu0 0.0
    %1523 = vmatpush2.msra.mxu0 0.0
    %1524 = vmatprep.subr.mxu0 0.0
    %1525 = vmatpush2.msra.mxu0 0.0
    %1526 = vmatprep.subr.mxu0 0.0
    %1527 = vmatpush2.msra.mxu0 0.0
    %1528 = vmatprep.mubr.f32.mxu0 0.0
    %1529 = vmatmul.mubr.f32.gmra.mxu0 %v1459
    %v1530 = vpop.f32.mrf.mxu0
    %v1531 = vadd.f32 %v1456, %v1530
    %v1532 = vpop.f32.mrf.mxu0
    %1533 = vmatprep.mubr.f32.mxu0 0.0
    %1534 = vmatmul.mubr.f32.gmra.mxu0 %v1462
    %v1535 = vpop.f32.mrf.mxu0
    %v1536 = vadd.f32 %v1456, %v1535
    %v1537 = vpop.f32.mrf.mxu0
    %1538 = vdwg.mxu0
    %v1539 = vadd.f32 %v939, %v1531
    %v1540 = vadd.f32 %v940, %v1536
    %s1541 = scalar_lea.vmem %s6, 1
    %v1542 = vld [vmem:[%s1541] sm:$0x1]
    %s1543 = scalar_lea.vmem %s7, 1
    %v1544 = vld [vmem:[%s1543] sm:$0x1]
    %v1545 = vsel %vm75, %v1539, 0.0
    %1546 = vadd.xlane.f32.xlu0 %v1545
    %v1547 = vpop.xlane.xlu0 %1546
    %v1548 = vsel %vm75, %v1540, 0.0
    %1549 = vadd.xlane.f32.xlu0 %v1548
    %v1550 = vpop.xlane.xlu0 %1549
    %v1551 = vmul.f32 %v1547, %v674
    %v1552 = vmul.f32 %v1550, %v674
    %v1553 = vsub.f32 %v1539, %v1551
    %v1554 = vsub.f32 %v1540, %v1552
    %v1555 = vmul.f32 %v1553, %v1553
    %v1556 = vmul.f32 %v1554, %v1554
    %v1557 = vsel %vm75, %v1555, 0.0
    %1558 = vadd.xlane.f32.xlu0 %v1557
    %v1559 = vpop.xlane.xlu0 %1558
    %v1560 = vsel %vm75, %v1556, 0.0
    %1561 = vadd.xlane.f32.xlu0 %v1560
    %v1562 = vpop.xlane.xlu0 %1561
    %v1563 = vmul.f32 %v1559, %v674
    %v1564 = vmul.f32 %v1562, %v674
    %v1565 = vadd.f32 %v1563, 1e-05
    %v1566 = vadd.f32 %v1564, 1e-05
    %v1567 = vrsqrt.pop %v1565
    %v1568 = vrsqrt.pop %v1566
    %v1569 = vmul.f32 %v1553, %v1567
    %v1570 = vmul.f32 %v1554, %v1568
    %v1572 = vlaneseq
    %v1573 = vshrl.u32 %v1572, 7
    %v1574 = vsub.s32 0, %v1573
    %v1575 = vrot.slane %v1542, %v1574
    %v1577 = vmul.f32 %v1569, %v1575
    %v1578 = vmul.f32 %v1570, %v1575
    %v1580 = vlaneseq
    %v1581 = vshrl.u32 %v1580, 7
    %v1582 = vsub.s32 0, %v1581
    %v1583 = vrot.slane %v1544, %v1582
    %v1585 = vadd.f32 %v1577, %v1583
    %v1586 = vadd.f32 %v1578, %v1583
    %s1587 = scalar_lea.vmem %s8, 8
    %v1588 = vld [vmem:[%s1587] sm:$0xff]
    %s1589 = scalar_lea.vmem %s9, 1
    %v1590 = vld [vmem:[%s1589] sm:$0x1]
    %v1592 = vlaneseq
    %v1593 = vshrl.u32 %v1592, 7
    %v1594 = vsub.s32 0, %v1593
    %v1595 = vrot.slane %v1590, %v1594
    %v1598 = vsel %vm75, %v1585, 0
    %v1601 = vsel %vm75, %v1586, 0
    %1603 = vmatprep.subr.mxu0 0.0
    %1604 = vmatpush1.msra.mxu0 0.0
    %1605 = vmatprep.subr.mxu0 0.0
    %1606 = vmatpush1.msra.mxu0 0.0
    %1607 = vmatprep.subr.mxu0 0.0
    %1608 = vmatpush1.msra.mxu0 0.0
    %1609 = vmatprep.subr.mxu0 0.0
    %1610 = vmatpush1.msra.mxu0 0.0
    %1611 = vmatprep.subr.mxu0 0.0
    %1612 = vmatpush1.msra.mxu0 0.0
    %1613 = vmatprep.subr.mxu0 0.0
    %1614 = vmatpush1.msra.mxu0 0.0
    %1615 = vmatprep.subr.mxu0 0.0
    %1616 = vmatpush1.msra.mxu0 0.0
    %1617 = vmatprep.subr.mxu0 0.0
    %1618 = vmatpush1.msra.mxu0 0.0
    %1619 = vmatprep.subr.mxu0 0.0
    %1620 = vmatpush1.msra.mxu0 0.0
    %1621 = vmatprep.subr.mxu0 0.0
    %1622 = vmatpush1.msra.mxu0 0.0
    %1623 = vmatprep.subr.mxu0 0.0
    %1624 = vmatpush1.msra.mxu0 0.0
    %1625 = vmatprep.subr.mxu0 0.0
    %1626 = vmatpush1.msra.mxu0 0.0
    %1627 = vmatprep.subr.mxu0 0.0
    %1628 = vmatpush1.msra.mxu0 0.0
    %1629 = vmatprep.subr.mxu0 0.0
    %1630 = vmatpush1.msra.mxu0 0.0
    %1631 = vmatprep.subr.mxu0 0.0
    %1632 = vmatpush1.msra.mxu0 0.0
    %1633 = vmatprep.subr.mxu0 0.0
    %1634 = vmatpush1.msra.mxu0 %v1588
    %1635 = vmatprep.subr.mxu0 0.0
    %1636 = vmatpush2.msra.mxu0 0.0
    %1637 = vmatprep.subr.mxu0 0.0
    %1638 = vmatpush2.msra.mxu0 0.0
    %1639 = vmatprep.subr.mxu0 0.0
    %1640 = vmatpush2.msra.mxu0 0.0
    %1641 = vmatprep.subr.mxu0 0.0
    %1642 = vmatpush2.msra.mxu0 0.0
    %1643 = vmatprep.subr.mxu0 0.0
    %1644 = vmatpush2.msra.mxu0 0.0
    %1645 = vmatprep.subr.mxu0 0.0
    %1646 = vmatpush2.msra.mxu0 0.0
    %1647 = vmatprep.subr.mxu0 0.0
    %1648 = vmatpush2.msra.mxu0 0.0
    %1649 = vmatprep.subr.mxu0 0.0
    %1650 = vmatpush2.msra.mxu0 0.0
    %1651 = vmatprep.subr.mxu0 0.0
    %1652 = vmatpush2.msra.mxu0 0.0
    %1653 = vmatprep.subr.mxu0 0.0
    %1654 = vmatpush2.msra.mxu0 0.0
    %1655 = vmatprep.subr.mxu0 0.0
    %1656 = vmatpush2.msra.mxu0 0.0
    %1657 = vmatprep.subr.mxu0 0.0
    %1658 = vmatpush2.msra.mxu0 0.0
    %1659 = vmatprep.subr.mxu0 0.0
    %1660 = vmatpush2.msra.mxu0 0.0
    %1661 = vmatprep.subr.mxu0 0.0
    %1662 = vmatpush2.msra.mxu0 0.0
    %1663 = vmatprep.subr.mxu0 0.0
    %1664 = vmatpush2.msra.mxu0 0.0
    %1665 = vmatprep.subr.mxu0 0.0
    %1666 = vmatpush2.msra.mxu0 0.0
    %1667 = vmatprep.mubr.f32.mxu0 0.0
    %1668 = vmatmul.mubr.f32.gmra.mxu0 %v1598
    %v1669 = vpop.f32.mrf.mxu0
    %v1670 = vadd.f32 %v1595, %v1669
    %v1671 = vpop.f32.mrf.mxu0
    %1672 = vmatprep.mubr.f32.mxu0 0.0
    %1673 = vmatmul.mubr.f32.gmra.mxu0 %v1601
    %v1674 = vpop.f32.mrf.mxu0
    %v1675 = vadd.f32 %v1595, %v1674
    %v1676 = vpop.f32.mrf.mxu0
    %1677 = vdwg.mxu0
    %v1678 = vmax.f32 %v1670, 0.0
    %v1679 = vmax.f32 %v1675, 0.0
    %s1680 = scalar_lea.vmem %s10, 32
    %v1681 = vld [vmem:[%s1680] sm:$0xff]
    %v1682 = vld [vmem:[%s1680 + $0x8] sm:$0xff]
    %v1683 = vld [vmem:[%s1680 + $0x10] sm:$0xff]
    %v1684 = vld [vmem:[%s1680 + $0x18] sm:$0xff]
    %s1685 = scalar_lea.vmem %s11, 1
    %v1686 = vld [vmem:[%s1685] sm:$0x1]
    %v1688 = vlaneseq
    %v1689 = vshrl.u32 %v1688, 7
    %v1690 = vsub.s32 0, %v1689
    %v1691 = vrot.slane %v1686, %v1690
    %v1694 = vsel %vm813, %v1678, 0
    %v1697 = vsel %vm813, %v1679, 0
    %1699 = vmatprep.subr.mxu0 0.0
    %1700 = vmatpush1.msra.mxu0 0.0
    %1701 = vmatprep.subr.mxu0 0.0
    %1702 = vmatpush1.msra.mxu0 0.0
    %1703 = vmatprep.subr.mxu0 0.0
    %1704 = vmatpush1.msra.mxu0 0.0
    %1705 = vmatprep.subr.mxu0 0.0
    %1706 = vmatpush1.msra.mxu0 0.0
    %1707 = vmatprep.subr.mxu0 0.0
    %1708 = vmatpush1.msra.mxu0 0.0
    %1709 = vmatprep.subr.mxu0 0.0
    %1710 = vmatpush1.msra.mxu0 0.0
    %1711 = vmatprep.subr.mxu0 0.0
    %1712 = vmatpush1.msra.mxu0 0.0
    %1713 = vmatprep.subr.mxu0 0.0
    %1714 = vmatpush1.msra.mxu0 0.0
    %1715 = vmatprep.subr.mxu0 0.0
    %1716 = vmatpush1.msra.mxu0 0.0
    %1717 = vmatprep.subr.mxu0 0.0
    %1718 = vmatpush1.msra.mxu0 0.0
    %1719 = vmatprep.subr.mxu0 0.0
    %1720 = vmatpush1.msra.mxu0 0.0
    %1721 = vmatprep.subr.mxu0 0.0
    %1722 = vmatpush1.msra.mxu0 0.0
    %1723 = vmatprep.subr.mxu0 0.0
    %1724 = vmatpush1.msra.mxu0 %v1684
    %1725 = vmatprep.subr.mxu0 0.0
    %1726 = vmatpush1.msra.mxu0 %v1683
    %1727 = vmatprep.subr.mxu0 0.0
    %1728 = vmatpush1.msra.mxu0 %v1682
    %1729 = vmatprep.subr.mxu0 0.0
    %1730 = vmatpush1.msra.mxu0 %v1681
    %1731 = vmatprep.subr.mxu0 0.0
    %1732 = vmatpush2.msra.mxu0 0.0
    %1733 = vmatprep.subr.mxu0 0.0
    %1734 = vmatpush2.msra.mxu0 0.0
    %1735 = vmatprep.subr.mxu0 0.0
    %1736 = vmatpush2.msra.mxu0 0.0
    %1737 = vmatprep.subr.mxu0 0.0
    %1738 = vmatpush2.msra.mxu0 0.0
    %1739 = vmatprep.subr.mxu0 0.0
    %1740 = vmatpush2.msra.mxu0 0.0
    %1741 = vmatprep.subr.mxu0 0.0
    %1742 = vmatpush2.msra.mxu0 0.0
    %1743 = vmatprep.subr.mxu0 0.0
    %1744 = vmatpush2.msra.mxu0 0.0
    %1745 = vmatprep.subr.mxu0 0.0
    %1746 = vmatpush2.msra.mxu0 0.0
    %1747 = vmatprep.subr.mxu0 0.0
    %1748 = vmatpush2.msra.mxu0 0.0
    %1749 = vmatprep.subr.mxu0 0.0
    %1750 = vmatpush2.msra.mxu0 0.0
    %1751 = vmatprep.subr.mxu0 0.0
    %1752 = vmatpush2.msra.mxu0 0.0
    %1753 = vmatprep.subr.mxu0 0.0
    %1754 = vmatpush2.msra.mxu0 0.0
    %1755 = vmatprep.subr.mxu0 0.0
    %1756 = vmatpush2.msra.mxu0 0.0
    %1757 = vmatprep.subr.mxu0 0.0
    %1758 = vmatpush2.msra.mxu0 0.0
    %1759 = vmatprep.subr.mxu0 0.0
    %1760 = vmatpush2.msra.mxu0 0.0
    %1761 = vmatprep.subr.mxu0 0.0
    %1762 = vmatpush2.msra.mxu0 0.0
    %1763 = vmatprep.mubr.f32.mxu0 0.0
    %1764 = vmatmul.mubr.f32.gmra.mxu0 %v1694
    %v1765 = vpop.f32.mrf.mxu0
    %v1766 = vadd.f32 %v1691, %v1765
    %v1767 = vpop.f32.mrf.mxu0
    %1768 = vmatprep.mubr.f32.mxu0 0.0
    %1769 = vmatmul.mubr.f32.gmra.mxu0 %v1697
    %v1770 = vpop.f32.mrf.mxu0
    %v1771 = vadd.f32 %v1691, %v1770
    %v1772 = vpop.f32.mrf.mxu0
    %1773 = vdwg.mxu0
    %v1774 = vadd.f32 %v1585, %v1766
    %v1775 = vadd.f32 %v1586, %v1771
    %s1776 = scalar_lea.vmem %s12, 1
    %v1777 = vld [vmem:[%s1776] sm:$0x1]
    %s1778 = scalar_lea.vmem %s13, 1
    %v1779 = vld [vmem:[%s1778] sm:$0x1]
    %v1780 = vsel %vm75, %v1774, 0.0
    %1781 = vadd.xlane.f32.xlu0 %v1780
    %v1782 = vpop.xlane.xlu0 %1781
    %v1783 = vsel %vm75, %v1775, 0.0
    %1784 = vadd.xlane.f32.xlu0 %v1783
    %v1785 = vpop.xlane.xlu0 %1784
    %v1786 = vmul.f32 %v1782, %v674
    %v1787 = vmul.f32 %v1785, %v674
    %v1788 = vsub.f32 %v1774, %v1786
    %v1789 = vsub.f32 %v1775, %v1787
    %v1790 = vmul.f32 %v1788, %v1788
    %v1791 = vmul.f32 %v1789, %v1789
    %v1792 = vsel %vm75, %v1790, 0.0
    %1793 = vadd.xlane.f32.xlu0 %v1792
    %v1794 = vpop.xlane.xlu0 %1793
    %v1795 = vsel %vm75, %v1791, 0.0
    %1796 = vadd.xlane.f32.xlu0 %v1795
    %v1797 = vpop.xlane.xlu0 %1796
    %v1798 = vmul.f32 %v1794, %v674
    %v1799 = vmul.f32 %v1797, %v674
    %v1800 = vadd.f32 %v1798, 1e-05
    %v1801 = vadd.f32 %v1799, 1e-05
    %v1802 = vrsqrt.pop %v1800
    %v1803 = vrsqrt.pop %v1801
    %v1804 = vmul.f32 %v1788, %v1802
    %v1805 = vmul.f32 %v1789, %v1803
    %v1807 = vlaneseq
    %v1808 = vshrl.u32 %v1807, 7
    %v1809 = vsub.s32 0, %v1808
    %v1810 = vrot.slane %v1777, %v1809
    %v1812 = vmul.f32 %v1804, %v1810
    %v1813 = vmul.f32 %v1805, %v1810
    %v1815 = vlaneseq
    %v1816 = vshrl.u32 %v1815, 7
    %v1817 = vsub.s32 0, %v1816
    %v1818 = vrot.slane %v1779, %v1817
    %v1820 = vadd.f32 %v1812, %v1818
    %v1821 = vadd.f32 %v1813, %v1818
    %v1822 = vld [vmem:[%s14] sm:$0xff]
    %v1824 = vsel %vm75, %v1820, 0
    %v1827 = vsel %vm75, %v1821, 0
    %1829 = vmatprep.subr.mxu0 0.0
    %1830 = vmatpush1.msra.mxu0 0.0
    %1831 = vmatprep.subr.mxu0 0.0
    %1832 = vmatpush1.msra.mxu0 0.0
    %1833 = vmatprep.subr.mxu0 0.0
    %1834 = vmatpush1.msra.mxu0 0.0
    %1835 = vmatprep.subr.mxu0 0.0
    %1836 = vmatpush1.msra.mxu0 0.0
    %1837 = vmatprep.subr.mxu0 0.0
    %1838 = vmatpush1.msra.mxu0 0.0
    %1839 = vmatprep.subr.mxu0 0.0
    %1840 = vmatpush1.msra.mxu0 0.0
    %1841 = vmatprep.subr.mxu0 0.0
    %1842 = vmatpush1.msra.mxu0 0.0
    %1843 = vmatprep.subr.mxu0 0.0
    %1844 = vmatpush1.msra.mxu0 0.0
    %1845 = vmatprep.subr.mxu0 0.0
    %1846 = vmatpush1.msra.mxu0 0.0
    %1847 = vmatprep.subr.mxu0 0.0
    %1848 = vmatpush1.msra.mxu0 0.0
    %1849 = vmatprep.subr.mxu0 0.0
    %1850 = vmatpush1.msra.mxu0 0.0
    %1851 = vmatprep.subr.mxu0 0.0
    %1852 = vmatpush1.msra.mxu0 0.0
    %1853 = vmatprep.subr.mxu0 0.0
    %1854 = vmatpush1.msra.mxu0 0.0
    %1855 = vmatprep.subr.mxu0 0.0
    %1856 = vmatpush1.msra.mxu0 0.0
    %1857 = vmatprep.subr.mxu0 0.0
    %1858 = vmatpush1.msra.mxu0 0.0
    %1859 = vmatprep.subr.mxu0 0.0
    %1860 = vmatpush1.msra.mxu0 %v1822
    %1861 = vmatprep.subr.mxu0 0.0
    %1862 = vmatpush2.msra.mxu0 0.0
    %1863 = vmatprep.subr.mxu0 0.0
    %1864 = vmatpush2.msra.mxu0 0.0
    %1865 = vmatprep.subr.mxu0 0.0
    %1866 = vmatpush2.msra.mxu0 0.0
    %1867 = vmatprep.subr.mxu0 0.0
    %1868 = vmatpush2.msra.mxu0 0.0
    %1869 = vmatprep.subr.mxu0 0.0
    %1870 = vmatpush2.msra.mxu0 0.0
    %1871 = vmatprep.subr.mxu0 0.0
    %1872 = vmatpush2.msra.mxu0 0.0
    %1873 = vmatprep.subr.mxu0 0.0
    %1874 = vmatpush2.msra.mxu0 0.0
    %1875 = vmatprep.subr.mxu0 0.0
    %1876 = vmatpush2.msra.mxu0 0.0
    %1877 = vmatprep.subr.mxu0 0.0
    %1878 = vmatpush2.msra.mxu0 0.0
    %1879 = vmatprep.subr.mxu0 0.0
    %1880 = vmatpush2.msra.mxu0 0.0
    %1881 = vmatprep.subr.mxu0 0.0
    %1882 = vmatpush2.msra.mxu0 0.0
    %1883 = vmatprep.subr.mxu0 0.0
    %1884 = vmatpush2.msra.mxu0 0.0
    %1885 = vmatprep.subr.mxu0 0.0
    %1886 = vmatpush2.msra.mxu0 0.0
    %1887 = vmatprep.subr.mxu0 0.0
    %1888 = vmatpush2.msra.mxu0 0.0
    %1889 = vmatprep.subr.mxu0 0.0
    %1890 = vmatpush2.msra.mxu0 0.0
    %1891 = vmatprep.subr.mxu0 0.0
    %1892 = vmatpush2.msra.mxu0 0.0
    %1893 = vmatprep.mubr.f32.mxu0 0.0
    %1894 = vmatmul.mubr.f32.gmra.mxu0 %v1824
    %v1895 = vpop.f32.mrf.mxu0
    %v1896 = vadd.f32 0.0, %v1895
    %v1897 = vpop.f32.mrf.mxu0
    %1898 = vmatprep.mubr.f32.mxu0 0.0
    %1899 = vmatmul.mubr.f32.gmra.mxu0 %v1827
    %v1900 = vpop.f32.mrf.mxu0
    %v1901 = vadd.f32 0.0, %v1900
    %v1902 = vpop.f32.mrf.mxu0
    %1903 = vdwg.mxu0
    %v1904 = vld [vmem:[%s15] sm:$0xff]
    %v1905 = vld [vmem:[%s15 + $0x8] sm:$0xff]
    %v1906 = vmul.f32 %v1896, %v1904
    %v1907 = vmul.f32 %v1901, %v1905
    %v1908 = vld [vmem:[%s16] sm:$0xff]
    %v1909 = vld [vmem:[%s16 + $0x8] sm:$0xff]
    %v1910 = vld [vmem:[%s16 + $0x10] sm:$0xff]
    %v1911 = vld [vmem:[%s16 + $0x18] sm:$0xff]
    %v1912 = vld [vmem:[%s16 + $0x20] sm:$0xff]
    %v1913 = vld [vmem:[%s16 + $0x28] sm:$0xff]
    %v1914 = vld [vmem:[%s16 + $0x30] sm:$0xff]
    %v1915 = vld [vmem:[%s16 + $0x38] sm:$0xff]
    %v1916 = vld [vmem:[%s16 + $0x40] sm:$0xff]
    %v1917 = vld [vmem:[%s16 + $0x48] sm:$0xff]
    %v1918 = vld [vmem:[%s16 + $0x50] sm:$0xff]
    %v1919 = vld [vmem:[%s16 + $0x58] sm:$0xff]
    %v1920 = vld [vmem:[%s16 + $0x60] sm:$0xff]
    %v1921 = vld [vmem:[%s16 + $0x68] sm:$0xff]
    %v1922 = vld [vmem:[%s16 + $0x70] sm:$0xff]
    %v1923 = vld [vmem:[%s16 + $0x78] sm:$0xff]
    %1924 = vmatprep.subr.mxu0 0.0
    %1925 = vmatpush1.msra.mxu0 %v1923
    %1926 = vmatprep.subr.mxu0 0.0
    %1927 = vmatpush1.msra.mxu0 %v1922
    %1928 = vmatprep.subr.mxu0 0.0
    %1929 = vmatpush1.msra.mxu0 %v1921
    %1930 = vmatprep.subr.mxu0 0.0
    %1931 = vmatpush1.msra.mxu0 %v1920
    %1932 = vmatprep.subr.mxu0 0.0
    %1933 = vmatpush1.msra.mxu0 %v1919
    %1934 = vmatprep.subr.mxu0 0.0
    %1935 = vmatpush1.msra.mxu0 %v1918
    %1936 = vmatprep.subr.mxu0 0.0
    %1937 = vmatpush1.msra.mxu0 %v1917
    %1938 = vmatprep.subr.mxu0 0.0
    %1939 = vmatpush1.msra.mxu0 %v1916
    %1940 = vmatprep.subr.mxu0 0.0
    %1941 = vmatpush1.msra.mxu0 %v1915
    %1942 = vmatprep.subr.mxu0 0.0
    %1943 = vmatpush1.msra.mxu0 %v1914
    %1944 = vmatprep.subr.mxu0 0.0
    %1945 = vmatpush1.msra.mxu0 %v1913
    %1946 = vmatprep.subr.mxu0 0.0
    %1947 = vmatpush1.msra.mxu0 %v1912
    %1948 = vmatprep.subr.mxu0 0.0
    %1949 = vmatpush1.msra.mxu0 %v1911
    %1950 = vmatprep.subr.mxu0 0.0
    %1951 = vmatpush1.msra.mxu0 %v1910
    %1952 = vmatprep.subr.mxu0 0.0
    %1953 = vmatpush1.msra.mxu0 %v1909
    %1954 = vmatprep.subr.mxu0 0.0
    %1955 = vmatpush1.msra.mxu0 %v1908
    %1956 = vmatprep.subr.mxu0 0.0
    %1957 = vmatpush2.msra.mxu0 0.0
    %1958 = vmatprep.subr.mxu0 0.0
    %1959 = vmatpush2.msra.mxu0 0.0
    %1960 = vmatprep.subr.mxu0 0.0
    %1961 = vmatpush2.msra.mxu0 0.0
    %1962 = vmatprep.subr.mxu0 0.0
    %1963 = vmatpush2.msra.mxu0 0.0
    %1964 = vmatprep.subr.mxu0 0.0
    %1965 = vmatpush2.msra.mxu0 0.0
    %1966 = vmatprep.subr.mxu0 0.0
    %1967 = vmatpush2.msra.mxu0 0.0
    %1968 = vmatprep.subr.mxu0 0.0
    %1969 = vmatpush2.msra.mxu0 0.0
    %1970 = vmatprep.subr.mxu0 0.0
    %1971 = vmatpush2.msra.mxu0 0.0
    %1972 = vmatprep.subr.mxu0 0.0
    %1973 = vmatpush2.msra.mxu0 0.0
    %1974 = vmatprep.subr.mxu0 0.0
    %1975 = vmatpush2.msra.mxu0 0.0
    %1976 = vmatprep.subr.mxu0 0.0
    %1977 = vmatpush2.msra.mxu0 0.0
    %1978 = vmatprep.subr.mxu0 0.0
    %1979 = vmatpush2.msra.mxu0 0.0
    %1980 = vmatprep.subr.mxu0 0.0
    %1981 = vmatpush2.msra.mxu0 0.0
    %1982 = vmatprep.subr.mxu0 0.0
    %1983 = vmatpush2.msra.mxu0 0.0
    %1984 = vmatprep.subr.mxu0 0.0
    %1985 = vmatpush2.msra.mxu0 0.0
    %1986 = vmatprep.subr.mxu0 0.0
    %1987 = vmatpush2.msra.mxu0 0.0
    %1988 = vmatprep.mubr.f32.mxu0 0.0
    %1989 = vmatmul.mubr.f32.gmra.mxu0 %v1906
    %v1990 = vpop.f32.mrf.mxu0
    %v1991 = vadd.f32 0.0, %v1990
    %v1992 = vpop.f32.mrf.mxu0
    %1993 = vmatprep.mubr.f32.mxu0 0.0
    %1994 = vmatmul.mubr.f32.gmra.mxu0 %v1907
    %v1995 = vpop.f32.mrf.mxu0
    %v1996 = vadd.f32 0.0, %v1995
    %v1997 = vpop.f32.mrf.mxu0
    %1998 = vdwg.mxu0
    %v1999 = vld [vmem:[%s17] sm:$0x3]
    %v2001 = vsel %vm251, %v1999, 0
    %2003 = vmatprep.subr.mxu0 0.0
    %2004 = vmatpush1.msra.mxu0 0.0
    %2005 = vmatprep.subr.mxu0 0.0
    %2006 = vmatpush1.msra.mxu0 0.0
    %2007 = vmatprep.subr.mxu0 0.0
    %2008 = vmatpush1.msra.mxu0 0.0
    %2009 = vmatprep.subr.mxu0 0.0
    %2010 = vmatpush1.msra.mxu0 0.0
    %2011 = vmatprep.subr.mxu0 0.0
    %2012 = vmatpush1.msra.mxu0 0.0
    %2013 = vmatprep.subr.mxu0 0.0
    %2014 = vmatpush1.msra.mxu0 0.0
    %2015 = vmatprep.subr.mxu0 0.0
    %2016 = vmatpush1.msra.mxu0 0.0
    %2017 = vmatprep.subr.mxu0 0.0
    %2018 = vmatpush1.msra.mxu0 0.0
    %2019 = vmatprep.subr.mxu0 0.0
    %2020 = vmatpush1.msra.mxu0 0.0
    %2021 = vmatprep.subr.mxu0 0.0
    %2022 = vmatpush1.msra.mxu0 0.0
    %2023 = vmatprep.subr.mxu0 0.0
    %2024 = vmatpush1.msra.mxu0 0.0
    %2025 = vmatprep.subr.mxu0 0.0
    %2026 = vmatpush1.msra.mxu0 0.0
    %2027 = vmatprep.subr.mxu0 0.0
    %2028 = vmatpush1.msra.mxu0 0.0
    %2029 = vmatprep.subr.mxu0 0.0
    %2030 = vmatpush1.msra.mxu0 0.0
    %2031 = vmatprep.subr.mxu0 0.0
    %2032 = vmatpush1.msra.mxu0 %v1996
    %2033 = vmatprep.subr.mxu0 0.0
    %2034 = vmatpush1.msra.mxu0 %v1991
    %2035 = vmatprep.subr.mxu0 0.0
    %2036 = vmatpush2.msra.mxu0 0.0
    %2037 = vmatprep.subr.mxu0 0.0
    %2038 = vmatpush2.msra.mxu0 0.0
    %2039 = vmatprep.subr.mxu0 0.0
    %2040 = vmatpush2.msra.mxu0 0.0
    %2041 = vmatprep.subr.mxu0 0.0
    %2042 = vmatpush2.msra.mxu0 0.0
    %2043 = vmatprep.subr.mxu0 0.0
    %2044 = vmatpush2.msra.mxu0 0.0
    %2045 = vmatprep.subr.mxu0 0.0
    %2046 = vmatpush2.msra.mxu0 0.0
    %2047 = vmatprep.subr.mxu0 0.0
    %2048 = vmatpush2.msra.mxu0 0.0
    %2049 = vmatprep.subr.mxu0 0.0
    %2050 = vmatpush2.msra.mxu0 0.0
    %2051 = vmatprep.subr.mxu0 0.0
    %2052 = vmatpush2.msra.mxu0 0.0
    %2053 = vmatprep.subr.mxu0 0.0
    %2054 = vmatpush2.msra.mxu0 0.0
    %2055 = vmatprep.subr.mxu0 0.0
    %2056 = vmatpush2.msra.mxu0 0.0
    %2057 = vmatprep.subr.mxu0 0.0
    %2058 = vmatpush2.msra.mxu0 0.0
    %2059 = vmatprep.subr.mxu0 0.0
    %2060 = vmatpush2.msra.mxu0 0.0
    %2061 = vmatprep.subr.mxu0 0.0
    %2062 = vmatpush2.msra.mxu0 0.0
    %2063 = vmatprep.subr.mxu0 0.0
    %2064 = vmatpush2.msra.mxu0 0.0
    %2065 = vmatprep.subr.mxu0 0.0
    %2066 = vmatpush2.msra.mxu0 0.0
    %2067 = vmatprep.mubr.f32.mxu0 0.0
    %2068 = vmatmul.mubr.f32.gmra.mxu0 %v2001
    %v2069 = vpop.f32.mrf.mxu0
    %v2070 = vadd.f32 0.0, %v2069
    %v2071 = vpop.f32.mrf.mxu0
    %2072 = vdwg.mxu0
    %vm2073 = vcmp.ge.f32.partialorder %v2070, 0.0
    %v2074 = vmul.f32 %v2070, 0.01
    %v2075 = vsel %vm2073, %v2070, %v2074
    %v2076 = vld [vmem:[%s18] sm:$0xff]
    %v2077 = vld [vmem:[%s18 + $0x8] sm:$0xff]
    %v2079 = vsel %vm251, %v2075, 0
    %2081 = vmatprep.subr.mxu0 0.0
    %2082 = vmatpush1.msra.mxu0 0.0
    %2083 = vmatprep.subr.mxu0 0.0
    %2084 = vmatpush1.msra.mxu0 0.0
    %2085 = vmatprep.subr.mxu0 0.0
    %2086 = vmatpush1.msra.mxu0 0.0
    %2087 = vmatprep.subr.mxu0 0.0
    %2088 = vmatpush1.msra.mxu0 0.0
    %2089 = vmatprep.subr.mxu0 0.0
    %2090 = vmatpush1.msra.mxu0 0.0
    %2091 = vmatprep.subr.mxu0 0.0
    %2092 = vmatpush1.msra.mxu0 0.0
    %2093 = vmatprep.subr.mxu0 0.0
    %2094 = vmatpush1.msra.mxu0 0.0
    %2095 = vmatprep.subr.mxu0 0.0
    %2096 = vmatpush1.msra.mxu0 0.0
    %2097 = vmatprep.subr.mxu0 0.0
    %2098 = vmatpush1.msra.mxu0 0.0
    %2099 = vmatprep.subr.mxu0 0.0
    %2100 = vmatpush1.msra.mxu0 0.0
    %2101 = vmatprep.subr.mxu0 0.0
    %2102 = vmatpush1.msra.mxu0 0.0
    %2103 = vmatprep.subr.mxu0 0.0
    %2104 = vmatpush1.msra.mxu0 0.0
    %2105 = vmatprep.subr.mxu0 0.0
    %2106 = vmatpush1.msra.mxu0 0.0
    %2107 = vmatprep.subr.mxu0 0.0
    %2108 = vmatpush1.msra.mxu0 0.0
    %2109 = vmatprep.subr.mxu0 0.0
    %2110 = vmatpush1.msra.mxu0 %v2077
    %2111 = vmatprep.subr.mxu0 0.0
    %2112 = vmatpush1.msra.mxu0 %v2076
    %2113 = vmatprep.subr.mxu0 0.0
    %2114 = vmatpush2.msra.mxu0 0.0
    %2115 = vmatprep.subr.mxu0 0.0
    %2116 = vmatpush2.msra.mxu0 0.0
    %2117 = vmatprep.subr.mxu0 0.0
    %2118 = vmatpush2.msra.mxu0 0.0
    %2119 = vmatprep.subr.mxu0 0.0
    %2120 = vmatpush2.msra.mxu0 0.0
    %2121 = vmatprep.subr.mxu0 0.0
    %2122 = vmatpush2.msra.mxu0 0.0
    %2123 = vmatprep.subr.mxu0 0.0
    %2124 = vmatpush2.msra.mxu0 0.0
    %2125 = vmatprep.subr.mxu0 0.0
    %2126 = vmatpush2.msra.mxu0 0.0
    %2127 = vmatprep.subr.mxu0 0.0
    %2128 = vmatpush2.msra.mxu0 0.0
    %2129 = vmatprep.subr.mxu0 0.0
    %2130 = vmatpush2.msra.mxu0 0.0
    %2131 = vmatprep.subr.mxu0 0.0
    %2132 = vmatpush2.msra.mxu0 0.0
    %2133 = vmatprep.subr.mxu0 0.0
    %2134 = vmatpush2.msra.mxu0 0.0
    %2135 = vmatprep.subr.mxu0 0.0
    %2136 = vmatpush2.msra.mxu0 0.0
    %2137 = vmatprep.subr.mxu0 0.0
    %2138 = vmatpush2.msra.mxu0 0.0
    %2139 = vmatprep.subr.mxu0 0.0
    %2140 = vmatpush2.msra.mxu0 0.0
    %2141 = vmatprep.subr.mxu0 0.0
    %2142 = vmatpush2.msra.mxu0 0.0
    %2143 = vmatprep.subr.mxu0 0.0
    %2144 = vmatpush2.msra.mxu0 0.0
    %2145 = vmatprep.mubr.f32.mxu0 0.0
    %2146 = vmatmul.mubr.f32.gmra.mxu0 %v2079
    %v2147 = vpop.f32.mrf.mxu0
    %v2148 = vadd.f32 0.0, %v2147
    %v2149 = vpop.f32.mrf.mxu0
    %2150 = vdwg.mxu0
    %vm2151 = vcmask 25600
    %2152 = vst.msk [vmem:[#allocation2] sm:$0x3] %vm2151, %v2148
    // Predicated region
    $region78: #{tpu_custom_call.1} parent=1 // pred_check
      _
    $region79: #{tpu_custom_call.1} parent=1 // pred_check_branch
      %2154 = sbr.rel (0) target = $region81
    $region80: #{tpu_custom_call.1} parent=1 // pred_region
      %s2156 = ssub.s32 32, 32
      %2157 = vsyncadd [#allocation3], %s2156
      %s2159 = sshll.u32 [#allocation2], 4
      %s2160 = int_to_ptr.vmem [resolvable:$true] %s2159
      %2162 = dma.vmem_to_hbm [thread:$0]  %s2160, 32, %s19, [#allocation3]
    $region81: #{tpu_custom_call.1} parent=1 // pred_fallthru
      _
    // Predicated region
    $region82: #{tpu_custom_call.1} parent=1 // pred_check
      _
    $region83: #{tpu_custom_call.1} parent=1 // pred_check_branch
      %2164 = sbr.rel (0) target = $region85
    $region84: #{tpu_custom_call.1} parent=1 // pred_region
      %2165 = dma.done [#allocation3], 32
    $region85: #{tpu_custom_call.1} parent=1 // pred_fallthru
      _
    %2166 = vsyncpa [#allocation3], 1

</llo_original>
